<compile_context>
chip_gen: v7x
topology: tpu7x:2x2x1
jax: 0.10.0
libtpu: 0.0.40
codegen_flags: <defaults>
</compile_context>

<pallas_src>
import functools

import jax
import jax.numpy as jnp
import numpy as np
from jax.experimental import pallas as pl
from jax.experimental.pallas import tpu as pltpu


# -----------------------------------------------------------------------------
# Tiling helpers
# -----------------------------------------------------------------------------
def _pick_tile(dim, target, step):
    """Largest multiple of `step` that divides `dim` and is <= target,
    falling back to the full dimension (always a legal full-array block)."""
    best = None
    t = step
    while t <= min(dim, target):
        if dim % t == 0:
            best = t
        t += step
    return best if best is not None else dim


def _pick_time_chunk(T, tb, E, H, budget_bytes):
    """Largest divisor of T whose per-chunk VMEM footprint fits the budget."""
    def bytes_for(tc):
        x_b = 2 * tc * tb * E * 2          # double-buffered bf16 input block
        y_b = 2 * tc * tb * H * 2          # double-buffered bf16 output block
        w_b = 2 * (E + H) * 4 * H * 2      # W_ih^T + W_hh^T (bf16), with margin
        st_b = 8 * tb * H * 4              # h0/c0 blocks + resident hT/cT
        return x_b + y_b + w_b + st_b
    best = 1
    for tc in range(1, T + 1):
        if T % tc == 0 and bytes_for(tc) <= budget_bytes:
            best = tc
    return best


# -----------------------------------------------------------------------------
# Fused LSTM layer kernel: input projection + recurrence + gate math.
# Grid = (batch blocks ["parallel"], time chunks ["arbitrary"]).
# Gate order matches PyTorch: i, f, g, o.
# -----------------------------------------------------------------------------
def _lstm_layer_kernel(x_ref, h0_ref, c0_ref, wih_ref, whh_ref, b_ref,
                       y_ref, hT_ref, cT_ref, *, unroll):
    tc = x_ref.shape[0]
    H = hT_ref.shape[-1]

    # hT/cT have per-batch-block constant index maps along the (sequential)
    # time axis -> they stay VMEM-resident and carry state across time chunks.
    @pl.when(pl.program_id(1) == 0)
    def _():
        hT_ref[...] = h0_ref[...]
        cT_ref[...] = c0_ref[...]

    bias = b_ref[...]                       # (1, 4H) f32, tiny -> hoist is fine

    def step(t, carry):
        h, c = carry                        # (tb, H) f32 vreg-carried state
        # Fused input projection (does not depend on h; overlapped with the
        # previous step's gate math via partial unroll) + recurrent projection.
        gates = (jnp.dot(x_ref[t], wih_ref[...],
                         preferred_element_type=jnp.float32)
                 + bias
                 + jnp.dot(h.astype(whh_ref.dtype), whh_ref[...],
                           preferred_element_type=jnp.float32))
        i_g = jax.nn.sigmoid(gates[:, 0 * H:1 * H])
        f_g = jax.nn.sigmoid(gates[:, 1 * H:2 * H])
        g_g = jnp.tanh(gates[:, 2 * H:3 * H])
        o_g = jax.nn.sigmoid(gates[:, 3 * H:4 * H])
        c_new = f_g * c + i_g * g_g
        h_new = o_g * jnp.tanh(c_new)
        y_ref[t] = h_new.astype(y_ref.dtype)   # bf16 inter-layer activation
        return (h_new, c_new)

    h, c = jax.lax.fori_loop(0, tc, step, (hT_ref[...], cT_ref[...]),
                             unroll=unroll)
    # Write the carried state back to the resident blocks once per chunk.
    hT_ref[...] = h
    cT_ref[...] = c


def lstm_layer(x, h0, c0, w_ih_t, w_hh_t, b,
               *, vmem_budget_bytes=32 * 1024 * 1024):
    """x: (T, Bp, E) bf16 time-major, h0/c0: (Bp, H) f32,
       w_ih_t: (E, 4H) bf16, w_hh_t: (H, 4H) bf16, b: (1, 4H) f32.
       Returns y (T, Bp, H) bf16, hT (Bp, H) f32, cT (Bp, H) f32."""
    T, Bp, E = x.shape
    H = w_hh_t.shape[0]

    # Batch block: split across the two v7x TensorCores when cleanly possible
    # (harmless single block on 1-TC v5e/v6e and for small batches).
    tb = Bp // 2 if (Bp >= 32 and Bp % 32 == 0) else Bp
    tc = _pick_time_chunk(T, tb, E, H, vmem_budget_bytes)
    unroll = max(1, min(tc, 8))

    kernel = functools.partial(_lstm_layer_kernel, unroll=unroll)
    y, hT, cT = pl.pallas_call(
        kernel,
        out_shape=(jax.ShapeDtypeStruct((T, Bp, H), jnp.bfloat16),
                   jax.ShapeDtypeStruct((Bp, H), jnp.float32),
                   jax.ShapeDtypeStruct((Bp, H), jnp.float32)),
        grid=(Bp // tb, T // tc),
        in_specs=[
            pl.BlockSpec((tc, tb, E), lambda bb, t: (t, bb, 0)),   # x (bf16)
            pl.BlockSpec((tb, H), lambda bb, t: (bb, 0)),          # h0
            pl.BlockSpec((tb, H), lambda bb, t: (bb, 0)),          # c0
            pl.BlockSpec((E, 4 * H), lambda bb, t: (0, 0)),        # W_ih^T
            pl.BlockSpec((H, 4 * H), lambda bb, t: (0, 0)),        # W_hh^T
            pl.BlockSpec((1, 4 * H), lambda bb, t: (0, 0)),        # bias
        ],
        out_specs=[
            pl.BlockSpec((tc, tb, H), lambda bb, t: (t, bb, 0)),   # y (bf16)
            pl.BlockSpec((tb, H), lambda bb, t: (bb, 0)),          # final h
            pl.BlockSpec((tb, H), lambda bb, t: (bb, 0)),          # final c
        ],
        compiler_params=pltpu.CompilerParams(
            dimension_semantics=("parallel", "arbitrary"),
            vmem_limit_bytes=48 * 1024 * 1024),
    )(x, h0, c0, w_ih_t, w_hh_t, b)
    return y, hT, cT


# -----------------------------------------------------------------------------
# Tiled linear kernel for the fc head.  Weight-outer grid ordering: the large
# (H, V) weight tile is DMA'd once; the small activation tile is re-fetched.
# -----------------------------------------------------------------------------
def _linear_kernel(x_ref, w_ref, b_ref, o_ref):
    o_ref[...] = (jnp.dot(x_ref[...], w_ref[...],
                          preferred_element_type=jnp.float32) + b_ref[...])


def linear(x, w, b):
    """x: (M, K) bf16, w: (K, N) bf16, b: (1, N) f32 -> (M, N) f32."""
    M, K = x.shape
    N = w.shape[-1]
    tm = _pick_tile(M, 512, 8)
    tn = _pick_tile(N, 1024, 128)
    return pl.pallas_call(
        _linear_kernel,
        out_shape=jax.ShapeDtypeStruct((M, N), jnp.float32),
        grid=(N // tn, M // tm),                      # M innermost -> weight reused
        in_specs=[
            pl.BlockSpec((tm, K), lambda j, i: (i, 0)),
            pl.BlockSpec((K, tn), lambda j, i: (0, j)),
            pl.BlockSpec((1, tn), lambda j, i: (0, j)),
        ],
        out_specs=pl.BlockSpec((tm, tn), lambda j, i: (i, j)),
        compiler_params=pltpu.CompilerParams(
            dimension_semantics=("parallel", "parallel"),
            vmem_limit_bytes=48 * 1024 * 1024),
    )(x, w, b)


# -----------------------------------------------------------------------------
# Decoder forward (mirrors the PyTorch module, eval semantics)
# -----------------------------------------------------------------------------
def decoder_forward(params, tokens, hidden, cell):
    """tokens: (B, T) int32, hidden/cell: (L, B, H).
       Returns (prediction (B, T, V), hidden (L, B, H), cell (L, B, H))."""
    B, T = tokens.shape
    L = hidden.shape[0]
    Bp = max(8, ((B + 7) // 8) * 8)                    # pad batch to >=8 sublanes

    tok_p = jnp.pad(tokens, ((0, Bp - B), (0, 0)))
    hid_p = jnp.pad(hidden, ((0, 0), (0, Bp - B), (0, 0)))
    cel_p = jnp.pad(cell, ((0, 0), (0, Bp - B), (0, 0)))

    # Embedding gather (XLA); output is bf16 time-major (T, Bp, E).
    x = jnp.take(params["emb_w"], tok_p.T, axis=0)

    new_h, new_c = [], []
    for l, layer in enumerate(params["lstm"]):
        y, hT, cT = lstm_layer(x, hid_p[l], cel_p[l],
                               layer["w_ih_t"], layer["w_hh_t"], layer["b"])
        x = y                                           # (T, Bp, H) bf16
        new_h.append(hT[:B])
        new_c.append(cT[:B])

    # Layout fixup on the H-wide activations (not the V-wide logits).
    y_bm = jnp.transpose(x[:, :B, :], (1, 0, 2)).reshape(B * T, -1)   # (B*T, H)
    pred = linear(y_bm, params["fc_w_t"], params["fc_b"])             # (B*T, V)
    pred = pred.reshape(B, T, -1)
    return pred, jnp.stack(new_h, axis=0), jnp.stack(new_c, axis=0)


# -----------------------------------------------------------------------------
# Pure-JAX reference with the same numerics (bf16 weights/activations, f32 acc)
# -----------------------------------------------------------------------------
def decoder_reference(params, tokens, hidden, cell):
    emb = jnp.take(params["emb_w"], tokens.T, axis=0)          # (T, B, E) bf16
    T, B, _ = emb.shape
    x = emb
    new_h, new_c = [], []
    for l, layer in enumerate(params["lstm"]):
        H = layer["w_hh_t"].shape[0]
        h, c = hidden[l], cell[l]

        def step(carry, x_t, layer=layer, H=H):
            h, c = carry
            gates = (jnp.dot(x_t, layer["w_ih_t"],
                             preferred_element_type=jnp.float32)
                     + layer["b"]
                     + jnp.dot(h.astype(jnp.bfloat16), layer["w_hh_t"],
                               preferred_element_type=jnp.float32))
            i = jax.nn.sigmoid(gates[:, :H])
            f = jax.nn.sigmoid(gates[:, H:2 * H])
            g = jnp.tanh(gates[:, 2 * H:3 * H])
            o = jax.nn.sigmoid(gates[:, 3 * H:])
            c = f * c + i * g
            h = o * jnp.tanh(c)
            return (h, c), h

        (h, c), ys = jax.lax.scan(step, (h, c), x)
        x = ys.astype(jnp.bfloat16)
        new_h.append(h)
        new_c.append(c)

    y_bm = jnp.transpose(x, (1, 0, 2)).reshape(B * T, -1)
    pred = (jnp.dot(y_bm, params["fc_w_t"], preferred_element_type=jnp.float32)
            + params["fc_b"]).reshape(B, T, -1)
    return pred, jnp.stack(new_h, 0), jnp.stack(new_c, 0)


# -----------------------------------------------------------------------------
# Deterministic parameter init (PyTorch-style uniform(-1/sqrt(H), 1/sqrt(H)))
# -----------------------------------------------------------------------------
def init_params(key, output_dim, emb_dim, hid_dim, n_layers):
    k = 1.0 / np.sqrt(hid_dim)
    keys = jax.random.split(key, 3 + 4 * n_layers)
    params = {
        "emb_w": jax.random.normal(keys[0], (output_dim, emb_dim),
                                   jnp.float32).astype(jnp.bfloat16),
        "fc_w_t": jax.random.uniform(keys[1], (hid_dim, output_dim),
                                     jnp.float32, -k, k).astype(jnp.bfloat16),
        "fc_b": jax.random.uniform(keys[2], (1, output_dim), jnp.float32, -k, k),
        "lstm": [],
    }
    for l in range(n_layers):
        in_dim = emb_dim if l == 0 else hid_dim
        kw = keys[3 + 4 * l: 3 + 4 * (l + 1)]
        w_ih = jax.random.uniform(kw[0], (4 * hid_dim, in_dim), jnp.float32, -k, k)
        w_hh = jax.random.uniform(kw[1], (4 * hid_dim, hid_dim), jnp.float32, -k, k)
        b_ih = jax.random.uniform(kw[2], (4 * hid_dim,), jnp.float32, -k, k)
        b_hh = jax.random.uniform(kw[3], (4 * hid_dim,), jnp.float32, -k, k)
        params["lstm"].append({
            "w_ih_t": w_ih.T.astype(jnp.bfloat16),    # (in_dim, 4H)
            "w_hh_t": w_hh.T.astype(jnp.bfloat16),    # (H, 4H)
            "b": (b_ih + b_hh)[None, :],              # (1, 4H) f32
        })
    return params


if __name__ == "__main__":
    OUTPUT_DIM = 16   # vocab size
    EMB_DIM = 32
    HID_DIM = 32
    N_LAYERS = 2
    BATCH = 2
    SEQ = 8

    root = jax.random.PRNGKey(0)
    k_par, k_tok, k_h, k_c = jax.random.split(root, 4)

    params = init_params(k_par, OUTPUT_DIM, EMB_DIM, HID_DIM, N_LAYERS)
    tokens = jax.random.randint(k_tok, (BATCH, SEQ), 0, OUTPUT_DIM, jnp.int32)
    hidden = jax.random.normal(k_h, (N_LAYERS, BATCH, HID_DIM), jnp.float32)
    cell = jax.random.normal(k_c, (N_LAYERS, BATCH, HID_DIM), jnp.float32)

    fwd = jax.jit(functools.partial(decoder_forward, params))
    pred, h_out, c_out = fwd(tokens, hidden, cell)
    jax.block_until_ready((pred, h_out, c_out))

    # Sanity-check against a pure-JAX reference using the same numerics.
    pred_r, h_r, c_r = decoder_reference(params, tokens, hidden, cell)
    assert pred.shape == (BATCH, SEQ, OUTPUT_DIM)
    assert h_out.shape == (N_LAYERS, BATCH, HID_DIM)
    assert c_out.shape == (N_LAYERS, BATCH, HID_DIM)
    np.testing.assert_allclose(np.asarray(pred), np.asarray(pred_r),
                               rtol=1e-2, atol=1e-2)
    np.testing.assert_allclose(np.asarray(h_out), np.asarray(h_r),
                               rtol=1e-2, atol=1e-2)
    np.testing.assert_allclose(np.asarray(c_out), np.asarray(c_r),
                               rtol=1e-2, atol=1e-2)

    print("KERNEL_OK")
</pallas_src>

<mosaic_0001>
module attributes {stable_mosaic.version = 11 : i64} {
  func.func @_lstm_layer_kernel(%arg0: i32, %arg1: i32, %arg2: memref<8x8x32xbf16, #tpu.memory_space<vmem>>, %arg3: memref<8x32xf32, #tpu.memory_space<vmem>>, %arg4: memref<8x32xf32, #tpu.memory_space<vmem>>, %arg5: memref<32x128xbf16, #tpu.memory_space<vmem>>, %arg6: memref<32x128xbf16, #tpu.memory_space<vmem>>, %arg7: memref<1x128xf32, #tpu.memory_space<vmem>>, %arg8: memref<8x8x32xbf16, #tpu.memory_space<vmem>>, %arg9: memref<8x32xf32, #tpu.memory_space<vmem>>, %arg10: memref<8x32xf32, #tpu.memory_space<vmem>>) attributes {dimension_semantics = [#tpu.dimension_semantics<parallel>, #tpu.dimension_semantics<arbitrary>], iteration_bounds = array<i64: 1, 1>, scalar_prefetch = 0 : i64, scratch_operands = 0 : i64, tpu.core_type = #tpu.core_type<tc>, window_params = [{transform_indices = @transform_0, window_bounds = array<i64: 8, 8, 32>}, {transform_indices = @transform_1, window_bounds = array<i64: 8, 32>}, {transform_indices = @transform_2, window_bounds = array<i64: 8, 32>}, {pipeline_mode = #tpu.pipeline_mode<synchronous>, transform_indices = @transform_3, window_bounds = array<i64: 32, 128>}, {pipeline_mode = #tpu.pipeline_mode<synchronous>, transform_indices = @transform_4, window_bounds = array<i64: 32, 128>}, {pipeline_mode = #tpu.pipeline_mode<synchronous>, transform_indices = @transform_5, window_bounds = array<i64: 1, 128>}, {transform_indices = @transform_6, window_bounds = array<i64: 8, 8, 32>}, {transform_indices = @transform_7, window_bounds = array<i64: 8, 32>}, {transform_indices = @transform_8, window_bounds = array<i64: 8, 32>}]} {
    %c0_i32 = arith.constant 0 : i32
    %0 = arith.cmpi eq, %arg1, %c0_i32 : i32
    %1 = arith.extui %0 : i1 to i32
    %c0_i32_0 = arith.constant 0 : i32
    %2 = arith.cmpi ne, %1, %c0_i32_0 : i32
    scf.if %2 {
      %c0_114 = arith.constant 0 : index
      %c0_115 = arith.constant 0 : index
      %336 = vector.load %arg3[%c0_114, %c0_115] : memref<8x32xf32, #tpu.memory_space<vmem>>, vector<8x32xf32>
      %c0_116 = arith.constant 0 : index
      %c0_117 = arith.constant 0 : index
      %337 = vector.load %arg9[%c0_116, %c0_117] : memref<8x32xf32, #tpu.memory_space<vmem>>, vector<8x32xf32>
      tpu.vector_store %arg9[%c0_116, %c0_117], %336 {strides = array<i32>} : memref<8x32xf32, #tpu.memory_space<vmem>>, vector<8x32xf32>,
      %c0_118 = arith.constant 0 : index
      %c0_119 = arith.constant 0 : index
      %338 = vector.load %arg4[%c0_118, %c0_119] : memref<8x32xf32, #tpu.memory_space<vmem>>, vector<8x32xf32>
      %c0_120 = arith.constant 0 : index
      %c0_121 = arith.constant 0 : index
      %339 = vector.load %arg10[%c0_120, %c0_121] : memref<8x32xf32, #tpu.memory_space<vmem>>, vector<8x32xf32>
      tpu.vector_store %arg10[%c0_120, %c0_121], %338 {strides = array<i32>} : memref<8x32xf32, #tpu.memory_space<vmem>>, vector<8x32xf32>,
    } else {
    }
    %c0 = arith.constant 0 : index
    %c0_1 = arith.constant 0 : index
    %3 = vector.load %arg7[%c0, %c0_1] : memref<1x128xf32, #tpu.memory_space<vmem>>, vector<1x128xf32>
    %c0_2 = arith.constant 0 : index
    %c0_3 = arith.constant 0 : index
    %4 = vector.load %arg9[%c0_2, %c0_3] : memref<8x32xf32, #tpu.memory_space<vmem>>, vector<8x32xf32>
    %c0_4 = arith.constant 0 : index
    %c0_5 = arith.constant 0 : index
    %5 = vector.load %arg10[%c0_4, %c0_5] : memref<8x32xf32, #tpu.memory_space<vmem>>, vector<8x32xf32>
    %c0_i32_6 = arith.constant 0 : i32
    %6 = arith.index_cast %c0_i32_6 : i32 to index
    %c0_7 = arith.constant 0 : index
    %c0_8 = arith.constant 0 : index
    %7 = vector.load %arg2[%6, %c0_7, %c0_8] : memref<8x8x32xbf16, #tpu.memory_space<vmem>>, vector<1x8x32xbf16>
    %8 = vector.shape_cast %7 : vector<1x8x32xbf16> to vector<8x32xbf16>
    %c0_9 = arith.constant 0 : index
    %c0_10 = arith.constant 0 : index
    %9 = vector.load %arg5[%c0_9, %c0_10] : memref<32x128xbf16, #tpu.memory_space<vmem>>, vector<32x128xbf16>
    %cst = arith.constant dense<0.000000e+00> : vector<8x128xf32>
    %10 = tpu.matmul %8, %9, %cst {dimension_numbers = #tpu.dot_dimension_numbers<[1], [0], [0], [1], [0, 0, 1, 1], [], []>} : vector<8x32xbf16>, vector<32x128xbf16>, vector<8x128xf32> -> vector<8x128xf32>
    %11 = vector.broadcast %3 : vector<1x128xf32> to vector<8x128xf32>
    %12 = arith.addf %10, %11 : vector<8x128xf32>
    %13 = arith.truncf %4 : vector<8x32xf32> to vector<8x32xbf16>
    %c0_11 = arith.constant 0 : index
    %c0_12 = arith.constant 0 : index
    %14 = vector.load %arg6[%c0_11, %c0_12] : memref<32x128xbf16, #tpu.memory_space<vmem>>, vector<32x128xbf16>
    %cst_13 = arith.constant dense<0.000000e+00> : vector<8x128xf32>
    %15 = tpu.matmul %13, %14, %cst_13 {dimension_numbers = #tpu.dot_dimension_numbers<[1], [0], [0], [1], [0, 0, 1, 1], [], []>} : vector<8x32xbf16>, vector<32x128xbf16>, vector<8x128xf32> -> vector<8x128xf32>
    %16 = arith.addf %12, %15 : vector<8x128xf32>
    %17 = vector.extract_strided_slice %16 {offsets = [0, 0], sizes = [8, 32], strides = [1, 1]} : vector<8x128xf32> to vector<8x32xf32>
    %18 = arith.negf %17 : vector<8x32xf32>
    %19 = math.exp %18 : vector<8x32xf32>
    %cst_14 = arith.constant 1.000000e+00 : f32
    %20 = vector.broadcast %cst_14 : f32 to vector<8x32xf32>
    %21 = arith.addf %20, %19 : vector<8x32xf32>
    %22 = arith.divf %20, %21 : vector<8x32xf32>
    %23 = vector.extract_strided_slice %16 {offsets = [0, 32], sizes = [8, 32], strides = [1, 1]} : vector<8x128xf32> to vector<8x32xf32>
    %24 = arith.negf %23 : vector<8x32xf32>
    %25 = math.exp %24 : vector<8x32xf32>
    %cst_15 = arith.constant 1.000000e+00 : f32
    %26 = vector.broadcast %cst_15 : f32 to vector<8x32xf32>
    %27 = arith.addf %26, %25 : vector<8x32xf32>
    %28 = arith.divf %26, %27 : vector<8x32xf32>
    %29 = vector.extract_strided_slice %16 {offsets = [0, 64], sizes = [8, 32], strides = [1, 1]} : vector<8x128xf32> to vector<8x32xf32>
    %30 = math.tanh %29 : vector<8x32xf32>
    %31 = vector.extract_strided_slice %16 {offsets = [0, 96], sizes = [8, 32], strides = [1, 1]} : vector<8x128xf32> to vector<8x32xf32>
    %32 = arith.negf %31 : vector<8x32xf32>
    %33 = math.exp %32 : vector<8x32xf32>
    %cst_16 = arith.constant 1.000000e+00 : f32
    %34 = vector.broadcast %cst_16 : f32 to vector<8x32xf32>
    %35 = arith.addf %34, %33 : vector<8x32xf32>
    %36 = arith.divf %34, %35 : vector<8x32xf32>
    %37 = arith.mulf %28, %5 : vector<8x32xf32>
    %38 = arith.mulf %22, %30 : vector<8x32xf32>
    %39 = arith.addf %37, %38 : vector<8x32xf32>
    %40 = math.tanh %39 : vector<8x32xf32>
    %41 = arith.mulf %36, %40 : vector<8x32xf32>
    %42 = arith.truncf %41 : vector<8x32xf32> to vector<8x32xbf16>
    %43 = arith.index_cast %c0_i32_6 : i32 to index
    %c0_17 = arith.constant 0 : index
    %c0_18 = arith.constant 0 : index
    %44 = vector.load %arg8[%43, %c0_17, %c0_18] : memref<8x8x32xbf16, #tpu.memory_space<vmem>>, vector<1x8x32xbf16>
    %45 = vector.shape_cast %44 : vector<1x8x32xbf16> to vector<8x32xbf16>
    %46 = vector.shape_cast %42 : vector<8x32xbf16> to vector<1x8x32xbf16>
    tpu.vector_store %arg8[%43, %c0_17, %c0_18], %46 {strides = array<i32>} : memref<8x8x32xbf16, #tpu.memory_space<vmem>>, vector<1x8x32xbf16>,
    %c1_i32 = arith.constant 1 : i32
    %47 = arith.index_cast %c1_i32 : i32 to index
    %c0_19 = arith.constant 0 : index
    %c0_20 = arith.constant 0 : index
    %48 = vector.load %arg2[%47, %c0_19, %c0_20] : memref<8x8x32xbf16, #tpu.memory_space<vmem>>, vector<1x8x32xbf16>
    %49 = vector.shape_cast %48 : vector<1x8x32xbf16> to vector<8x32xbf16>
    %c0_21 = arith.constant 0 : index
    %c0_22 = arith.constant 0 : index
    %50 = vector.load %arg5[%c0_21, %c0_22] : memref<32x128xbf16, #tpu.memory_space<vmem>>, vector<32x128xbf16>
    %cst_23 = arith.constant dense<0.000000e+00> : vector<8x128xf32>
    %51 = tpu.matmul %49, %50, %cst_23 {dimension_numbers = #tpu.dot_dimension_numbers<[1], [0], [0], [1], [0, 0, 1, 1], [], []>} : vector<8x32xbf16>, vector<32x128xbf16>, vector<8x128xf32> -> vector<8x128xf32>
    %52 = vector.broadcast %3 : vector<1x128xf32> to vector<8x128xf32>
    %53 = arith.addf %51, %52 : vector<8x128xf32>
    %54 = arith.truncf %41 : vector<8x32xf32> to vector<8x32xbf16>
    %c0_24 = arith.constant 0 : index
    %c0_25 = arith.constant 0 : index
    %55 = vector.load %arg6[%c0_24, %c0_25] : memref<32x128xbf16, #tpu.memory_space<vmem>>, vector<32x128xbf16>
    %cst_26 = arith.constant dense<0.000000e+00> : vector<8x128xf32>
    %56 = tpu.matmul %54, %55, %cst_26 {dimension_numbers = #tpu.dot_dimension_numbers<[1], [0], [0], [1], [0, 0, 1, 1], [], []>} : vector<8x32xbf16>, vector<32x128xbf16>, vector<8x128xf32> -> vector<8x128xf32>
    %57 = arith.addf %53, %56 : vector<8x128xf32>
    %58 = vector.extract_strided_slice %57 {offsets = [0, 0], sizes = [8, 32], strides = [1, 1]} : vector<8x128xf32> to vector<8x32xf32>
    %59 = arith.negf %58 : vector<8x32xf32>
    %60 = math.exp %59 : vector<8x32xf32>
    %cst_27 = arith.constant 1.000000e+00 : f32
    %61 = vector.broadcast %cst_27 : f32 to vector<8x32xf32>
    %62 = arith.addf %61, %60 : vector<8x32xf32>
    %63 = arith.divf %61, %62 : vector<8x32xf32>
    %64 = vector.extract_strided_slice %57 {offsets = [0, 32], sizes = [8, 32], strides = [1, 1]} : vector<8x128xf32> to vector<8x32xf32>
    %65 = arith.negf %64 : vector<8x32xf32>
    %66 = math.exp %65 : vector<8x32xf32>
    %cst_28 = arith.constant 1.000000e+00 : f32
    %67 = vector.broadcast %cst_28 : f32 to vector<8x32xf32>
    %68 = arith.addf %67, %66 : vector<8x32xf32>
    %69 = arith.divf %67, %68 : vector<8x32xf32>
    %70 = vector.extract_strided_slice %57 {offsets = [0, 64], sizes = [8, 32], strides = [1, 1]} : vector<8x128xf32> to vector<8x32xf32>
    %71 = math.tanh %70 : vector<8x32xf32>
    %72 = vector.extract_strided_slice %57 {offsets = [0, 96], sizes = [8, 32], strides = [1, 1]} : vector<8x128xf32> to vector<8x32xf32>
    %73 = arith.negf %72 : vector<8x32xf32>
    %74 = math.exp %73 : vector<8x32xf32>
    %cst_29 = arith.constant 1.000000e+00 : f32
    %75 = vector.broadcast %cst_29 : f32 to vector<8x32xf32>
    %76 = arith.addf %75, %74 : vector<8x32xf32>
    %77 = arith.divf %75, %76 : vector<8x32xf32>
    %78 = arith.mulf %69, %39 : vector<8x32xf32>
    %79 = arith.mulf %63, %71 : vector<8x32xf32>
    %80 = arith.addf %78, %79 : vector<8x32xf32>
    %81 = math.tanh %80 : vector<8x32xf32>
    %82 = arith.mulf %77, %81 : vector<8x32xf32>
    %83 = arith.truncf %82 : vector<8x32xf32> to vector<8x32xbf16>
    %84 = arith.index_cast %c1_i32 : i32 to index
    %c0_30 = arith.constant 0 : index
    %c0_31 = arith.constant 0 : index
    %85 = vector.load %arg8[%84, %c0_30, %c0_31] : memref<8x8x32xbf16, #tpu.memory_space<vmem>>, vector<1x8x32xbf16>
    %86 = vector.shape_cast %85 : vector<1x8x32xbf16> to vector<8x32xbf16>
    %87 = vector.shape_cast %83 : vector<8x32xbf16> to vector<1x8x32xbf16>
    tpu.vector_store %arg8[%84, %c0_30, %c0_31], %87 {strides = array<i32>} : memref<8x8x32xbf16, #tpu.memory_space<vmem>>, vector<1x8x32xbf16>,
    %c2_i32 = arith.constant 2 : i32
    %88 = arith.index_cast %c2_i32 : i32 to index
    %c0_32 = arith.constant 0 : index
    %c0_33 = arith.constant 0 : index
    %89 = vector.load %arg2[%88, %c0_32, %c0_33] : memref<8x8x32xbf16, #tpu.memory_space<vmem>>, vector<1x8x32xbf16>
    %90 = vector.shape_cast %89 : vector<1x8x32xbf16> to vector<8x32xbf16>
    %c0_34 = arith.constant 0 : index
    %c0_35 = arith.constant 0 : index
    %91 = vector.load %arg5[%c0_34, %c0_35] : memref<32x128xbf16, #tpu.memory_space<vmem>>, vector<32x128xbf16>
    %cst_36 = arith.constant dense<0.000000e+00> : vector<8x128xf32>
    %92 = tpu.matmul %90, %91, %cst_36 {dimension_numbers = #tpu.dot_dimension_numbers<[1], [0], [0], [1], [0, 0, 1, 1], [], []>} : vector<8x32xbf16>, vector<32x128xbf16>, vector<8x128xf32> -> vector<8x128xf32>
    %93 = vector.broadcast %3 : vector<1x128xf32> to vector<8x128xf32>
    %94 = arith.addf %92, %93 : vector<8x128xf32>
    %95 = arith.truncf %82 : vector<8x32xf32> to vector<8x32xbf16>
    %c0_37 = arith.constant 0 : index
    %c0_38 = arith.constant 0 : index
    %96 = vector.load %arg6[%c0_37, %c0_38] : memref<32x128xbf16, #tpu.memory_space<vmem>>, vector<32x128xbf16>
    %cst_39 = arith.constant dense<0.000000e+00> : vector<8x128xf32>
    %97 = tpu.matmul %95, %96, %cst_39 {dimension_numbers = #tpu.dot_dimension_numbers<[1], [0], [0], [1], [0, 0, 1, 1], [], []>} : vector<8x32xbf16>, vector<32x128xbf16>, vector<8x128xf32> -> vector<8x128xf32>
    %98 = arith.addf %94, %97 : vector<8x128xf32>
    %99 = vector.extract_strided_slice %98 {offsets = [0, 0], sizes = [8, 32], strides = [1, 1]} : vector<8x128xf32> to vector<8x32xf32>
    %100 = arith.negf %99 : vector<8x32xf32>
    %101 = math.exp %100 : vector<8x32xf32>
    %cst_40 = arith.constant 1.000000e+00 : f32
    %102 = vector.broadcast %cst_40 : f32 to vector<8x32xf32>
    %103 = arith.addf %102, %101 : vector<8x32xf32>
    %104 = arith.divf %102, %103 : vector<8x32xf32>
    %105 = vector.extract_strided_slice %98 {offsets = [0, 32], sizes = [8, 32], strides = [1, 1]} : vector<8x128xf32> to vector<8x32xf32>
    %106 = arith.negf %105 : vector<8x32xf32>
    %107 = math.exp %106 : vector<8x32xf32>
    %cst_41 = arith.constant 1.000000e+00 : f32
    %108 = vector.broadcast %cst_41 : f32 to vector<8x32xf32>
    %109 = arith.addf %108, %107 : vector<8x32xf32>
    %110 = arith.divf %108, %109 : vector<8x32xf32>
    %111 = vector.extract_strided_slice %98 {offsets = [0, 64], sizes = [8, 32], strides = [1, 1]} : vector<8x128xf32> to vector<8x32xf32>
    %112 = math.tanh %111 : vector<8x32xf32>
    %113 = vector.extract_strided_slice %98 {offsets = [0, 96], sizes = [8, 32], strides = [1, 1]} : vector<8x128xf32> to vector<8x32xf32>
    %114 = arith.negf %113 : vector<8x32xf32>
    %115 = math.exp %114 : vector<8x32xf32>
    %cst_42 = arith.constant 1.000000e+00 : f32
    %116 = vector.broadcast %cst_42 : f32 to vector<8x32xf32>
    %117 = arith.addf %116, %115 : vector<8x32xf32>
    %118 = arith.divf %116, %117 : vector<8x32xf32>
    %119 = arith.mulf %110, %80 : vector<8x32xf32>
    %120 = arith.mulf %104, %112 : vector<8x32xf32>
    %121 = arith.addf %119, %120 : vector<8x32xf32>
    %122 = math.tanh %121 : vector<8x32xf32>
    %123 = arith.mulf %118, %122 : vector<8x32xf32>
    %124 = arith.truncf %123 : vector<8x32xf32> to vector<8x32xbf16>
    %125 = arith.index_cast %c2_i32 : i32 to index
    %c0_43 = arith.constant 0 : index
    %c0_44 = arith.constant 0 : index
    %126 = vector.load %arg8[%125, %c0_43, %c0_44] : memref<8x8x32xbf16, #tpu.memory_space<vmem>>, vector<1x8x32xbf16>
    %127 = vector.shape_cast %126 : vector<1x8x32xbf16> to vector<8x32xbf16>
    %128 = vector.shape_cast %124 : vector<8x32xbf16> to vector<1x8x32xbf16>
    tpu.vector_store %arg8[%125, %c0_43, %c0_44], %128 {strides = array<i32>} : memref<8x8x32xbf16, #tpu.memory_space<vmem>>, vector<1x8x32xbf16>,
    %c3_i32 = arith.constant 3 : i32
    %129 = arith.index_cast %c3_i32 : i32 to index
    %c0_45 = arith.constant 0 : index
    %c0_46 = arith.constant 0 : index
    %130 = vector.load %arg2[%129, %c0_45, %c0_46] : memref<8x8x32xbf16, #tpu.memory_space<vmem>>, vector<1x8x32xbf16>
    %131 = vector.shape_cast %130 : vector<1x8x32xbf16> to vector<8x32xbf16>
    %c0_47 = arith.constant 0 : index
    %c0_48 = arith.constant 0 : index
    %132 = vector.load %arg5[%c0_47, %c0_48] : memref<32x128xbf16, #tpu.memory_space<vmem>>, vector<32x128xbf16>
    %cst_49 = arith.constant dense<0.000000e+00> : vector<8x128xf32>
    %133 = tpu.matmul %131, %132, %cst_49 {dimension_numbers = #tpu.dot_dimension_numbers<[1], [0], [0], [1], [0, 0, 1, 1], [], []>} : vector<8x32xbf16>, vector<32x128xbf16>, vector<8x128xf32> -> vector<8x128xf32>
    %134 = vector.broadcast %3 : vector<1x128xf32> to vector<8x128xf32>
    %135 = arith.addf %133, %134 : vector<8x128xf32>
    %136 = arith.truncf %123 : vector<8x32xf32> to vector<8x32xbf16>
    %c0_50 = arith.constant 0 : index
    %c0_51 = arith.constant 0 : index
    %137 = vector.load %arg6[%c0_50, %c0_51] : memref<32x128xbf16, #tpu.memory_space<vmem>>, vector<32x128xbf16>
    %cst_52 = arith.constant dense<0.000000e+00> : vector<8x128xf32>
    %138 = tpu.matmul %136, %137, %cst_52 {dimension_numbers = #tpu.dot_dimension_numbers<[1], [0], [0], [1], [0, 0, 1, 1], [], []>} : vector<8x32xbf16>, vector<32x128xbf16>, vector<8x128xf32> -> vector<8x128xf32>
    %139 = arith.addf %135, %138 : vector<8x128xf32>
    %140 = vector.extract_strided_slice %139 {offsets = [0, 0], sizes = [8, 32], strides = [1, 1]} : vector<8x128xf32> to vector<8x32xf32>
    %141 = arith.negf %140 : vector<8x32xf32>
    %142 = math.exp %141 : vector<8x32xf32>
    %cst_53 = arith.constant 1.000000e+00 : f32
    %143 = vector.broadcast %cst_53 : f32 to vector<8x32xf32>
    %144 = arith.addf %143, %142 : vector<8x32xf32>
    %145 = arith.divf %143, %144 : vector<8x32xf32>
    %146 = vector.extract_strided_slice %139 {offsets = [0, 32], sizes = [8, 32], strides = [1, 1]} : vector<8x128xf32> to vector<8x32xf32>
    %147 = arith.negf %146 : vector<8x32xf32>
    %148 = math.exp %147 : vector<8x32xf32>
    %cst_54 = arith.constant 1.000000e+00 : f32
    %149 = vector.broadcast %cst_54 : f32 to vector<8x32xf32>
    %150 = arith.addf %149, %148 : vector<8x32xf32>
    %151 = arith.divf %149, %150 : vector<8x32xf32>
    %152 = vector.extract_strided_slice %139 {offsets = [0, 64], sizes = [8, 32], strides = [1, 1]} : vector<8x128xf32> to vector<8x32xf32>
    %153 = math.tanh %152 : vector<8x32xf32>
    %154 = vector.extract_strided_slice %139 {offsets = [0, 96], sizes = [8, 32], strides = [1, 1]} : vector<8x128xf32> to vector<8x32xf32>
    %155 = arith.negf %154 : vector<8x32xf32>
    %156 = math.exp %155 : vector<8x32xf32>
    %cst_55 = arith.constant 1.000000e+00 : f32
    %157 = vector.broadcast %cst_55 : f32 to vector<8x32xf32>
    %158 = arith.addf %157, %156 : vector<8x32xf32>
    %159 = arith.divf %157, %158 : vector<8x32xf32>
    %160 = arith.mulf %151, %121 : vector<8x32xf32>
    %161 = arith.mulf %145, %153 : vector<8x32xf32>
    %162 = arith.addf %160, %161 : vector<8x32xf32>
    %163 = math.tanh %162 : vector<8x32xf32>
    %164 = arith.mulf %159, %163 : vector<8x32xf32>
    %165 = arith.truncf %164 : vector<8x32xf32> to vector<8x32xbf16>
    %166 = arith.index_cast %c3_i32 : i32 to index
    %c0_56 = arith.constant 0 : index
    %c0_57 = arith.constant 0 : index
    %167 = vector.load %arg8[%166, %c0_56, %c0_57] : memref<8x8x32xbf16, #tpu.memory_space<vmem>>, vector<1x8x32xbf16>
    %168 = vector.shape_cast %167 : vector<1x8x32xbf16> to vector<8x32xbf16>
    %169 = vector.shape_cast %165 : vector<8x32xbf16> to vector<1x8x32xbf16>
    tpu.vector_store %arg8[%166, %c0_56, %c0_57], %169 {strides = array<i32>} : memref<8x8x32xbf16, #tpu.memory_space<vmem>>, vector<1x8x32xbf16>,
    %c4_i32 = arith.constant 4 : i32
    %170 = arith.index_cast %c4_i32 : i32 to index
    %c0_58 = arith.constant 0 : index
    %c0_59 = arith.constant 0 : index
    %171 = vector.load %arg2[%170, %c0_58, %c0_59] : memref<8x8x32xbf16, #tpu.memory_space<vmem>>, vector<1x8x32xbf16>
    %172 = vector.shape_cast %171 : vector<1x8x32xbf16> to vector<8x32xbf16>
    %c0_60 = arith.constant 0 : index
    %c0_61 = arith.constant 0 : index
    %173 = vector.load %arg5[%c0_60, %c0_61] : memref<32x128xbf16, #tpu.memory_space<vmem>>, vector<32x128xbf16>
    %cst_62 = arith.constant dense<0.000000e+00> : vector<8x128xf32>
    %174 = tpu.matmul %172, %173, %cst_62 {dimension_numbers = #tpu.dot_dimension_numbers<[1], [0], [0], [1], [0, 0, 1, 1], [], []>} : vector<8x32xbf16>, vector<32x128xbf16>, vector<8x128xf32> -> vector<8x128xf32>
    %175 = vector.broadcast %3 : vector<1x128xf32> to vector<8x128xf32>
    %176 = arith.addf %174, %175 : vector<8x128xf32>
    %177 = arith.truncf %164 : vector<8x32xf32> to vector<8x32xbf16>
    %c0_63 = arith.constant 0 : index
    %c0_64 = arith.constant 0 : index
    %178 = vector.load %arg6[%c0_63, %c0_64] : memref<32x128xbf16, #tpu.memory_space<vmem>>, vector<32x128xbf16>
    %cst_65 = arith.constant dense<0.000000e+00> : vector<8x128xf32>
    %179 = tpu.matmul %177, %178, %cst_65 {dimension_numbers = #tpu.dot_dimension_numbers<[1], [0], [0], [1], [0, 0, 1, 1], [], []>} : vector<8x32xbf16>, vector<32x128xbf16>, vector<8x128xf32> -> vector<8x128xf32>
    %180 = arith.addf %176, %179 : vector<8x128xf32>
    %181 = vector.extract_strided_slice %180 {offsets = [0, 0], sizes = [8, 32], strides = [1, 1]} : vector<8x128xf32> to vector<8x32xf32>
    %182 = arith.negf %181 : vector<8x32xf32>
    %183 = math.exp %182 : vector<8x32xf32>
    %cst_66 = arith.constant 1.000000e+00 : f32
    %184 = vector.broadcast %cst_66 : f32 to vector<8x32xf32>
    %185 = arith.addf %184, %183 : vector<8x32xf32>
    %186 = arith.divf %184, %185 : vector<8x32xf32>
    %187 = vector.extract_strided_slice %180 {offsets = [0, 32], sizes = [8, 32], strides = [1, 1]} : vector<8x128xf32> to vector<8x32xf32>
    %188 = arith.negf %187 : vector<8x32xf32>
    %189 = math.exp %188 : vector<8x32xf32>
    %cst_67 = arith.constant 1.000000e+00 : f32
    %190 = vector.broadcast %cst_67 : f32 to vector<8x32xf32>
    %191 = arith.addf %190, %189 : vector<8x32xf32>
    %192 = arith.divf %190, %191 : vector<8x32xf32>
    %193 = vector.extract_strided_slice %180 {offsets = [0, 64], sizes = [8, 32], strides = [1, 1]} : vector<8x128xf32> to vector<8x32xf32>
    %194 = math.tanh %193 : vector<8x32xf32>
    %195 = vector.extract_strided_slice %180 {offsets = [0, 96], sizes = [8, 32], strides = [1, 1]} : vector<8x128xf32> to vector<8x32xf32>
    %196 = arith.negf %195 : vector<8x32xf32>
    %197 = math.exp %196 : vector<8x32xf32>
    %cst_68 = arith.constant 1.000000e+00 : f32
    %198 = vector.broadcast %cst_68 : f32 to vector<8x32xf32>
    %199 = arith.addf %198, %197 : vector<8x32xf32>
    %200 = arith.divf %198, %199 : vector<8x32xf32>
    %201 = arith.mulf %192, %162 : vector<8x32xf32>
    %202 = arith.mulf %186, %194 : vector<8x32xf32>
    %203 = arith.addf %201, %202 : vector<8x32xf32>
    %204 = math.tanh %203 : vector<8x32xf32>
    %205 = arith.mulf %200, %204 : vector<8x32xf32>
    %206 = arith.truncf %205 : vector<8x32xf32> to vector<8x32xbf16>
    %207 = arith.index_cast %c4_i32 : i32 to index
    %c0_69 = arith.constant 0 : index
    %c0_70 = arith.constant 0 : index
    %208 = vector.load %arg8[%207, %c0_69, %c0_70] : memref<8x8x32xbf16, #tpu.memory_space<vmem>>, vector<1x8x32xbf16>
    %209 = vector.shape_cast %208 : vector<1x8x32xbf16> to vector<8x32xbf16>
    %210 = vector.shape_cast %206 : vector<8x32xbf16> to vector<1x8x32xbf16>
    tpu.vector_store %arg8[%207, %c0_69, %c0_70], %210 {strides = array<i32>} : memref<8x8x32xbf16, #tpu.memory_space<vmem>>, vector<1x8x32xbf16>,
    %c5_i32 = arith.constant 5 : i32
    %211 = arith.index_cast %c5_i32 : i32 to index
    %c0_71 = arith.constant 0 : index
    %c0_72 = arith.constant 0 : index
    %212 = vector.load %arg2[%211, %c0_71, %c0_72] : memref<8x8x32xbf16, #tpu.memory_space<vmem>>, vector<1x8x32xbf16>
    %213 = vector.shape_cast %212 : vector<1x8x32xbf16> to vector<8x32xbf16>
    %c0_73 = arith.constant 0 : index
    %c0_74 = arith.constant 0 : index
    %214 = vector.load %arg5[%c0_73, %c0_74] : memref<32x128xbf16, #tpu.memory_space<vmem>>, vector<32x128xbf16>
    %cst_75 = arith.constant dense<0.000000e+00> : vector<8x128xf32>
    %215 = tpu.matmul %213, %214, %cst_75 {dimension_numbers = #tpu.dot_dimension_numbers<[1], [0], [0], [1], [0, 0, 1, 1], [], []>} : vector<8x32xbf16>, vector<32x128xbf16>, vector<8x128xf32> -> vector<8x128xf32>
    %216 = vector.broadcast %3 : vector<1x128xf32> to vector<8x128xf32>
    %217 = arith.addf %215, %216 : vector<8x128xf32>
    %218 = arith.truncf %205 : vector<8x32xf32> to vector<8x32xbf16>
    %c0_76 = arith.constant 0 : index
    %c0_77 = arith.constant 0 : index
    %219 = vector.load %arg6[%c0_76, %c0_77] : memref<32x128xbf16, #tpu.memory_space<vmem>>, vector<32x128xbf16>
    %cst_78 = arith.constant dense<0.000000e+00> : vector<8x128xf32>
    %220 = tpu.matmul %218, %219, %cst_78 {dimension_numbers = #tpu.dot_dimension_numbers<[1], [0], [0], [1], [0, 0, 1, 1], [], []>} : vector<8x32xbf16>, vector<32x128xbf16>, vector<8x128xf32> -> vector<8x128xf32>
    %221 = arith.addf %217, %220 : vector<8x128xf32>
    %222 = vector.extract_strided_slice %221 {offsets = [0, 0], sizes = [8, 32], strides = [1, 1]} : vector<8x128xf32> to vector<8x32xf32>
    %223 = arith.negf %222 : vector<8x32xf32>
    %224 = math.exp %223 : vector<8x32xf32>
    %cst_79 = arith.constant 1.000000e+00 : f32
    %225 = vector.broadcast %cst_79 : f32 to vector<8x32xf32>
    %226 = arith.addf %225, %224 : vector<8x32xf32>
    %227 = arith.divf %225, %226 : vector<8x32xf32>
    %228 = vector.extract_strided_slice %221 {offsets = [0, 32], sizes = [8, 32], strides = [1, 1]} : vector<8x128xf32> to vector<8x32xf32>
    %229 = arith.negf %228 : vector<8x32xf32>
    %230 = math.exp %229 : vector<8x32xf32>
    %cst_80 = arith.constant 1.000000e+00 : f32
    %231 = vector.broadcast %cst_80 : f32 to vector<8x32xf32>
    %232 = arith.addf %231, %230 : vector<8x32xf32>
    %233 = arith.divf %231, %232 : vector<8x32xf32>
    %234 = vector.extract_strided_slice %221 {offsets = [0, 64], sizes = [8, 32], strides = [1, 1]} : vector<8x128xf32> to vector<8x32xf32>
    %235 = math.tanh %234 : vector<8x32xf32>
    %236 = vector.extract_strided_slice %221 {offsets = [0, 96], sizes = [8, 32], strides = [1, 1]} : vector<8x128xf32> to vector<8x32xf32>
    %237 = arith.negf %236 : vector<8x32xf32>
    %238 = math.exp %237 : vector<8x32xf32>
    %cst_81 = arith.constant 1.000000e+00 : f32
    %239 = vector.broadcast %cst_81 : f32 to vector<8x32xf32>
    %240 = arith.addf %239, %238 : vector<8x32xf32>
    %241 = arith.divf %239, %240 : vector<8x32xf32>
    %242 = arith.mulf %233, %203 : vector<8x32xf32>
    %243 = arith.mulf %227, %235 : vector<8x32xf32>
    %244 = arith.addf %242, %243 : vector<8x32xf32>
    %245 = math.tanh %244 : vector<8x32xf32>
    %246 = arith.mulf %241, %245 : vector<8x32xf32>
    %247 = arith.truncf %246 : vector<8x32xf32> to vector<8x32xbf16>
    %248 = arith.index_cast %c5_i32 : i32 to index
    %c0_82 = arith.constant 0 : index
    %c0_83 = arith.constant 0 : index
    %249 = vector.load %arg8[%248, %c0_82, %c0_83] : memref<8x8x32xbf16, #tpu.memory_space<vmem>>, vector<1x8x32xbf16>
    %250 = vector.shape_cast %249 : vector<1x8x32xbf16> to vector<8x32xbf16>
    %251 = vector.shape_cast %247 : vector<8x32xbf16> to vector<1x8x32xbf16>
    tpu.vector_store %arg8[%248, %c0_82, %c0_83], %251 {strides = array<i32>} : memref<8x8x32xbf16, #tpu.memory_space<vmem>>, vector<1x8x32xbf16>,
    %c6_i32 = arith.constant 6 : i32
    %252 = arith.index_cast %c6_i32 : i32 to index
    %c0_84 = arith.constant 0 : index
    %c0_85 = arith.constant 0 : index
    %253 = vector.load %arg2[%252, %c0_84, %c0_85] : memref<8x8x32xbf16, #tpu.memory_space<vmem>>, vector<1x8x32xbf16>
    %254 = vector.shape_cast %253 : vector<1x8x32xbf16> to vector<8x32xbf16>
    %c0_86 = arith.constant 0 : index
    %c0_87 = arith.constant 0 : index
    %255 = vector.load %arg5[%c0_86, %c0_87] : memref<32x128xbf16, #tpu.memory_space<vmem>>, vector<32x128xbf16>
    %cst_88 = arith.constant dense<0.000000e+00> : vector<8x128xf32>
    %256 = tpu.matmul %254, %255, %cst_88 {dimension_numbers = #tpu.dot_dimension_numbers<[1], [0], [0], [1], [0, 0, 1, 1], [], []>} : vector<8x32xbf16>, vector<32x128xbf16>, vector<8x128xf32> -> vector<8x128xf32>
    %257 = vector.broadcast %3 : vector<1x128xf32> to vector<8x128xf32>
    %258 = arith.addf %256, %257 : vector<8x128xf32>
    %259 = arith.truncf %246 : vector<8x32xf32> to vector<8x32xbf16>
    %c0_89 = arith.constant 0 : index
    %c0_90 = arith.constant 0 : index
    %260 = vector.load %arg6[%c0_89, %c0_90] : memref<32x128xbf16, #tpu.memory_space<vmem>>, vector<32x128xbf16>
    %cst_91 = arith.constant dense<0.000000e+00> : vector<8x128xf32>
    %261 = tpu.matmul %259, %260, %cst_91 {dimension_numbers = #tpu.dot_dimension_numbers<[1], [0], [0], [1], [0, 0, 1, 1], [], []>} : vector<8x32xbf16>, vector<32x128xbf16>, vector<8x128xf32> -> vector<8x128xf32>
    %262 = arith.addf %258, %261 : vector<8x128xf32>
    %263 = vector.extract_strided_slice %262 {offsets = [0, 0], sizes = [8, 32], strides = [1, 1]} : vector<8x128xf32> to vector<8x32xf32>
    %264 = arith.negf %263 : vector<8x32xf32>
    %265 = math.exp %264 : vector<8x32xf32>
    %cst_92 = arith.constant 1.000000e+00 : f32
    %266 = vector.broadcast %cst_92 : f32 to vector<8x32xf32>
    %267 = arith.addf %266, %265 : vector<8x32xf32>
    %268 = arith.divf %266, %267 : vector<8x32xf32>
    %269 = vector.extract_strided_slice %262 {offsets = [0, 32], sizes = [8, 32], strides = [1, 1]} : vector<8x128xf32> to vector<8x32xf32>
    %270 = arith.negf %269 : vector<8x32xf32>
    %271 = math.exp %270 : vector<8x32xf32>
    %cst_93 = arith.constant 1.000000e+00 : f32
    %272 = vector.broadcast %cst_93 : f32 to vector<8x32xf32>
    %273 = arith.addf %272, %271 : vector<8x32xf32>
    %274 = arith.divf %272, %273 : vector<8x32xf32>
    %275 = vector.extract_strided_slice %262 {offsets = [0, 64], sizes = [8, 32], strides = [1, 1]} : vector<8x128xf32> to vector<8x32xf32>
    %276 = math.tanh %275 : vector<8x32xf32>
    %277 = vector.extract_strided_slice %262 {offsets = [0, 96], sizes = [8, 32], strides = [1, 1]} : vector<8x128xf32> to vector<8x32xf32>
    %278 = arith.negf %277 : vector<8x32xf32>
    %279 = math.exp %278 : vector<8x32xf32>
    %cst_94 = arith.constant 1.000000e+00 : f32
    %280 = vector.broadcast %cst_94 : f32 to vector<8x32xf32>
    %281 = arith.addf %280, %279 : vector<8x32xf32>
    %282 = arith.divf %280, %281 : vector<8x32xf32>
    %283 = arith.mulf %274, %244 : vector<8x32xf32>
    %284 = arith.mulf %268, %276 : vector<8x32xf32>
    %285 = arith.addf %283, %284 : vector<8x32xf32>
    %286 = math.tanh %285 : vector<8x32xf32>
    %287 = arith.mulf %282, %286 : vector<8x32xf32>
    %288 = arith.truncf %287 : vector<8x32xf32> to vector<8x32xbf16>
    %289 = arith.index_cast %c6_i32 : i32 to index
    %c0_95 = arith.constant 0 : index
    %c0_96 = arith.constant 0 : index
    %290 = vector.load %arg8[%289, %c0_95, %c0_96] : memref<8x8x32xbf16, #tpu.memory_space<vmem>>, vector<1x8x32xbf16>
    %291 = vector.shape_cast %290 : vector<1x8x32xbf16> to vector<8x32xbf16>
    %292 = vector.shape_cast %288 : vector<8x32xbf16> to vector<1x8x32xbf16>
    tpu.vector_store %arg8[%289, %c0_95, %c0_96], %292 {strides = array<i32>} : memref<8x8x32xbf16, #tpu.memory_space<vmem>>, vector<1x8x32xbf16>,
    %c7_i32 = arith.constant 7 : i32
    %293 = arith.index_cast %c7_i32 : i32 to index
    %c0_97 = arith.constant 0 : index
    %c0_98 = arith.constant 0 : index
    %294 = vector.load %arg2[%293, %c0_97, %c0_98] : memref<8x8x32xbf16, #tpu.memory_space<vmem>>, vector<1x8x32xbf16>
    %295 = vector.shape_cast %294 : vector<1x8x32xbf16> to vector<8x32xbf16>
    %c0_99 = arith.constant 0 : index
    %c0_100 = arith.constant 0 : index
    %296 = vector.load %arg5[%c0_99, %c0_100] : memref<32x128xbf16, #tpu.memory_space<vmem>>, vector<32x128xbf16>
    %cst_101 = arith.constant dense<0.000000e+00> : vector<8x128xf32>
    %297 = tpu.matmul %295, %296, %cst_101 {dimension_numbers = #tpu.dot_dimension_numbers<[1], [0], [0], [1], [0, 0, 1, 1], [], []>} : vector<8x32xbf16>, vector<32x128xbf16>, vector<8x128xf32> -> vector<8x128xf32>
    %298 = vector.broadcast %3 : vector<1x128xf32> to vector<8x128xf32>
    %299 = arith.addf %297, %298 : vector<8x128xf32>
    %300 = arith.truncf %287 : vector<8x32xf32> to vector<8x32xbf16>
    %c0_102 = arith.constant 0 : index
    %c0_103 = arith.constant 0 : index
    %301 = vector.load %arg6[%c0_102, %c0_103] : memref<32x128xbf16, #tpu.memory_space<vmem>>, vector<32x128xbf16>
    %cst_104 = arith.constant dense<0.000000e+00> : vector<8x128xf32>
    %302 = tpu.matmul %300, %301, %cst_104 {dimension_numbers = #tpu.dot_dimension_numbers<[1], [0], [0], [1], [0, 0, 1, 1], [], []>} : vector<8x32xbf16>, vector<32x128xbf16>, vector<8x128xf32> -> vector<8x128xf32>
    %303 = arith.addf %299, %302 : vector<8x128xf32>
    %304 = vector.extract_strided_slice %303 {offsets = [0, 0], sizes = [8, 32], strides = [1, 1]} : vector<8x128xf32> to vector<8x32xf32>
    %305 = arith.negf %304 : vector<8x32xf32>
    %306 = math.exp %305 : vector<8x32xf32>
    %cst_105 = arith.constant 1.000000e+00 : f32
    %307 = vector.broadcast %cst_105 : f32 to vector<8x32xf32>
    %308 = arith.addf %307, %306 : vector<8x32xf32>
    %309 = arith.divf %307, %308 : vector<8x32xf32>
    %310 = vector.extract_strided_slice %303 {offsets = [0, 32], sizes = [8, 32], strides = [1, 1]} : vector<8x128xf32> to vector<8x32xf32>
    %311 = arith.negf %310 : vector<8x32xf32>
    %312 = math.exp %311 : vector<8x32xf32>
    %cst_106 = arith.constant 1.000000e+00 : f32
    %313 = vector.broadcast %cst_106 : f32 to vector<8x32xf32>
    %314 = arith.addf %313, %312 : vector<8x32xf32>
    %315 = arith.divf %313, %314 : vector<8x32xf32>
    %316 = vector.extract_strided_slice %303 {offsets = [0, 64], sizes = [8, 32], strides = [1, 1]} : vector<8x128xf32> to vector<8x32xf32>
    %317 = math.tanh %316 : vector<8x32xf32>
    %318 = vector.extract_strided_slice %303 {offsets = [0, 96], sizes = [8, 32], strides = [1, 1]} : vector<8x128xf32> to vector<8x32xf32>
    %319 = arith.negf %318 : vector<8x32xf32>
    %320 = math.exp %319 : vector<8x32xf32>
    %cst_107 = arith.constant 1.000000e+00 : f32
    %321 = vector.broadcast %cst_107 : f32 to vector<8x32xf32>
    %322 = arith.addf %321, %320 : vector<8x32xf32>
    %323 = arith.divf %321, %322 : vector<8x32xf32>
    %324 = arith.mulf %315, %285 : vector<8x32xf32>
    %325 = arith.mulf %309, %317 : vector<8x32xf32>
    %326 = arith.addf %324, %325 : vector<8x32xf32>
    %327 = math.tanh %326 : vector<8x32xf32>
    %328 = arith.mulf %323, %327 : vector<8x32xf32>
    %329 = arith.truncf %328 : vector<8x32xf32> to vector<8x32xbf16>
    %330 = arith.index_cast %c7_i32 : i32 to index
    %c0_108 = arith.constant 0 : index
    %c0_109 = arith.constant 0 : index
    %331 = vector.load %arg8[%330, %c0_108, %c0_109] : memref<8x8x32xbf16, #tpu.memory_space<vmem>>, vector<1x8x32xbf16>
    %332 = vector.shape_cast %331 : vector<1x8x32xbf16> to vector<8x32xbf16>
    %333 = vector.shape_cast %329 : vector<8x32xbf16> to vector<1x8x32xbf16>
    tpu.vector_store %arg8[%330, %c0_108, %c0_109], %333 {strides = array<i32>} : memref<8x8x32xbf16, #tpu.memory_space<vmem>>, vector<1x8x32xbf16>,
    %c8_i32 = arith.constant 8 : i32
    %c0_110 = arith.constant 0 : index
    %c0_111 = arith.constant 0 : index
    %334 = vector.load %arg9[%c0_110, %c0_111] : memref<8x32xf32, #tpu.memory_space<vmem>>, vector<8x32xf32>
    tpu.vector_store %arg9[%c0_110, %c0_111], %328 {strides = array<i32>} : memref<8x32xf32, #tpu.memory_space<vmem>>, vector<8x32xf32>,
    %c0_112 = arith.constant 0 : index
    %c0_113 = arith.constant 0 : index
    %335 = vector.load %arg10[%c0_112, %c0_113] : memref<8x32xf32, #tpu.memory_space<vmem>>, vector<8x32xf32>
    tpu.vector_store %arg10[%c0_112, %c0_113], %326 {strides = array<i32>} : memref<8x32xf32, #tpu.memory_space<vmem>>, vector<8x32xf32>,
    return
  }
  func.func @transform_0(%arg0: i32, %arg1: i32) -> (i32, i32, i32) {
    %c0_i32 = arith.constant 0 : i32
    %c0_i32_0 = arith.constant 0 : i32
    return %arg1, %arg0, %c0_i32 : i32, i32, i32
  }
  func.func @transform_1(%arg0: i32, %arg1: i32) -> (i32, i32) {
    %c0_i32 = arith.constant 0 : i32
    %c0_i32_0 = arith.constant 0 : i32
    return %arg0, %c0_i32 : i32, i32
  }
  func.func @transform_2(%arg0: i32, %arg1: i32) -> (i32, i32) {
    %c0_i32 = arith.constant 0 : i32
    %c0_i32_0 = arith.constant 0 : i32
    return %arg0, %c0_i32 : i32, i32
  }
  func.func @transform_3(%arg0: i32, %arg1: i32) -> (i32, i32) {
    %c0_i32 = arith.constant 0 : i32
    %c0_i32_0 = arith.constant 0 : i32
    %c0_i32_1 = arith.constant 0 : i32
    return %c0_i32, %c0_i32_0 : i32, i32
  }
  func.func @transform_4(%arg0: i32, %arg1: i32) -> (i32, i32) {
    %c0_i32 = arith.constant 0 : i32
    %c0_i32_0 = arith.constant 0 : i32
    %c0_i32_1 = arith.constant 0 : i32
    return %c0_i32, %c0_i32_0 : i32, i32
  }
  func.func @transform_5(%arg0: i32, %arg1: i32) -> (i32, i32) {
    %c0_i32 = arith.constant 0 : i32
    %c0_i32_0 = arith.constant 0 : i32
    %c0_i32_1 = arith.constant 0 : i32
    return %c0_i32, %c0_i32_0 : i32, i32
  }
  func.func @transform_6(%arg0: i32, %arg1: i32) -> (i32, i32, i32) {
    %c0_i32 = arith.constant 0 : i32
    %c0_i32_0 = arith.constant 0 : i32
    return %arg1, %arg0, %c0_i32 : i32, i32, i32
  }
  func.func @transform_7(%arg0: i32, %arg1: i32) -> (i32, i32) {
    %c0_i32 = arith.constant 0 : i32
    %c0_i32_0 = arith.constant 0 : i32
    return %arg0, %c0_i32 : i32, i32
  }
  func.func @transform_8(%arg0: i32, %arg1: i32) -> (i32, i32) {
    %c0_i32 = arith.constant 0 : i32
    %c0_i32_0 = arith.constant 0 : i32
    return %arg0, %c0_i32 : i32, i32
  }
}

module attributes {stable_mosaic.version = 11 : i64} {
  func.func @_linear_kernel(%arg0: i32, %arg1: i32, %arg2: memref<16x32xbf16, #tpu.memory_space<vmem>>, %arg3: memref<32x16xbf16, #tpu.memory_space<vmem>>, %arg4: memref<1x16xf32, #tpu.memory_space<vmem>>, %arg5: memref<16x16xf32, #tpu.memory_space<vmem>>) attributes {dimension_semantics = [#tpu.dimension_semantics<parallel>, #tpu.dimension_semantics<parallel>], iteration_bounds = array<i64: 1, 1>, scalar_prefetch = 0 : i64, scratch_operands = 0 : i64, tpu.core_type = #tpu.core_type<tc>, window_params = [{transform_indices = @transform_0, window_bounds = array<i64: 16, 32>}, {transform_indices = @transform_1, window_bounds = array<i64: 32, 16>}, {transform_indices = @transform_2, window_bounds = array<i64: 1, 16>}, {transform_indices = @transform_3, window_bounds = array<i64: 16, 16>}]} {
    %c0 = arith.constant 0 : index
    %c0_0 = arith.constant 0 : index
    %0 = vector.load %arg2[%c0, %c0_0] : memref<16x32xbf16, #tpu.memory_space<vmem>>, vector<16x32xbf16>
    %c0_1 = arith.constant 0 : index
    %c0_2 = arith.constant 0 : index
    %1 = vector.load %arg3[%c0_1, %c0_2] : memref<32x16xbf16, #tpu.memory_space<vmem>>, vector<32x16xbf16>
    %cst = arith.constant dense<0.000000e+00> : vector<16x16xf32>
    %2 = tpu.matmul %0, %1, %cst {dimension_numbers = #tpu.dot_dimension_numbers<[1], [0], [0], [1], [0, 0, 1, 1], [], []>} : vector<16x32xbf16>, vector<32x16xbf16>, vector<16x16xf32> -> vector<16x16xf32>
    %c0_3 = arith.constant 0 : index
    %c0_4 = arith.constant 0 : index
    %3 = vector.load %arg4[%c0_3, %c0_4] : memref<1x16xf32, #tpu.memory_space<vmem>>, vector<1x16xf32>
    %4 = vector.broadcast %3 : vector<1x16xf32> to vector<16x16xf32>
    %5 = arith.addf %2, %4 : vector<16x16xf32>
    %c0_5 = arith.constant 0 : index
    %c0_6 = arith.constant 0 : index
    %6 = vector.load %arg5[%c0_5, %c0_6] : memref<16x16xf32, #tpu.memory_space<vmem>>, vector<16x16xf32>
    tpu.vector_store %arg5[%c0_5, %c0_6], %5 {strides = array<i32>} : memref<16x16xf32, #tpu.memory_space<vmem>>, vector<16x16xf32>,
    return
  }
  func.func @transform_0(%arg0: i32, %arg1: i32) -> (i32, i32) {
    %c0_i32 = arith.constant 0 : i32
    %c0_i32_0 = arith.constant 0 : i32
    return %arg1, %c0_i32 : i32, i32
  }
  func.func @transform_1(%arg0: i32, %arg1: i32) -> (i32, i32) {
    %c0_i32 = arith.constant 0 : i32
    %c0_i32_0 = arith.constant 0 : i32
    return %c0_i32, %arg0 : i32, i32
  }
  func.func @transform_2(%arg0: i32, %arg1: i32) -> (i32, i32) {
    %c0_i32 = arith.constant 0 : i32
    %c0_i32_0 = arith.constant 0 : i32
    return %c0_i32, %arg0 : i32, i32
  }
  func.func @transform_3(%arg0: i32, %arg1: i32) -> (i32, i32) {
    %c0_i32 = arith.constant 0 : i32
    return %arg1, %arg0 : i32, i32
  }
}

</mosaic_0001>

<llo_original>
// kernel: decoder_forward.5
$region0: #{decoder_forward.5}
  #allocation0 [shape = 'u32[]', space=smem, size = 0x4, offset = 0x4, fixed_abs, tag = 'smem constant byte address 0x4 - core index']
  #allocation1 [shape = 'u32[144,128]{1,0:T(1,128)}', space=vmem, size = 0x12000, scoped, tag = 'internal scratch']
  %s0 = inlined_call_operand.vmem [shape: bf16[16,32], index: 0, kind: input, shape index: {}]
  %s1 = inlined_call_operand.vmem [shape: bf16[32,16], index: 1, kind: input, shape index: {}]
  %s2 = inlined_call_operand.vmem [shape: f32[1,16], index: 2, kind: input, shape index: {}]
  %s3 = inlined_call_operand.hbm [shape: f32[16,16], index: 3, kind: output, shape index: {}]
  %s4 = sld [smem:[#allocation0]]
  $region22: #{decoder_forward.5} parent=0
    _
  %s6 = ssub.s32 1, %s4
  %s7 = scalar_select 0, %s6, %s4
  $region1: #{decoder_forward.5} parent=0
    #allocation2 [shape = 'u8[8192]{0}', space=vmem, size = 0x2000, scoped, tag = 'output window, operand 0, single buffered']
    #allocation3 [shape = 's32[1]{0}', space=sflag, size = 0x4, scoped, tag = 'scoped memory for decoder_forward.5']
    %8 = vsyncpa [#allocation3], 0
    // Predicated region
    $region2: #{decoder_forward.5} parent=1 // pred_check
      _
    $region3: #{decoder_forward.5} parent=1 // pred_check_branch
      %10 = sbr.rel (0) target = $region5
    $region4: #{decoder_forward.5} parent=1 // pred_region
      _
    $region5: #{decoder_forward.5} parent=1 // pred_fallthru
      _
    // Predicated region
    $region6: #{decoder_forward.5} parent=1 // pred_check
      _
    $region7: #{decoder_forward.5} parent=1 // pred_check_branch
      %12 = sbr.rel (0) target = $region9
    $region8: #{decoder_forward.5} parent=1 // pred_region
      _
    $region9: #{decoder_forward.5} parent=1 // pred_fallthru
      _
    // Predicated region
    $region10: #{decoder_forward.5} parent=1 // pred_check
      _
    $region11: #{decoder_forward.5} parent=1 // pred_check_branch
      %14 = sbr.rel (0) target = $region13
    $region12: #{decoder_forward.5} parent=1 // pred_region
      _
    $region13: #{decoder_forward.5} parent=1 // pred_fallthru
      _
    %v16 = vld [vmem:[%s0] sm:$0xf]
    %v17 = vld [vmem:[%s0 + $0x4] sm:$0xf]
    %v18 = vld [vmem:[%s1] sm:$0xf]
    %v19 = vld [vmem:[%s1 + $0x4] sm:$0xf]
    %v20 = vld [vmem:[%s1 + $0x8] sm:$0xf]
    %v21 = vld [vmem:[%s1 + $0xc] sm:$0xf]
    %v22 = vld [vmem:[%s2] sm:$0x1]
    %v24 = vlaneseq
    %v25 = vshrl.u32 %v24, 7
    %v26 = vsub.s32 0, %v25
    %v27 = vrot.slane %v22, %v26
    %v31 = vunpack.c.l.b16 %v16
    %v32 = vunpack.c.l.b16 %v17
    %v33 = vpack.c.b16 %v32, %v31
    %v38 = vunpack.c.l.b16 %v18
    %v39 = vunpack.c.l.b16 %v19
    %v40 = vunpack.c.l.b16 %v20
    %v41 = vunpack.c.l.b16 %v21
    %v42 = vpack.c.b16 %v39, %v38
    %v43 = vpack.c.b16 %v41, %v40
    %vm46 = vcmask 261120
    %v48 = vsel %vm46, %v33, 0
    %50 = vmatprep.subr.bf16.mxu0 0
    %51 = vmatpush1.bf16.msra.mxu0 %v42
    %52 = vmatprep.subr.bf16.mxu0 0
    %53 = vmatpush1.bf16.msra.mxu0 %v43
    %54 = vmatprep.subr.bf16.mxu0 0
    %55 = vmatpush1.bf16.msra.mxu0 0
    %56 = vmatprep.subr.bf16.mxu0 0
    %57 = vmatpush1.bf16.msra.mxu0 0
    %58 = vmatprep.subr.bf16.mxu0 0
    %59 = vmatpush1.bf16.msra.mxu0 0
    %60 = vmatprep.subr.bf16.mxu0 0
    %61 = vmatpush1.bf16.msra.mxu0 0
    %62 = vmatprep.subr.bf16.mxu0 0
    %63 = vmatpush1.bf16.msra.mxu0 0
    %64 = vmatprep.subr.bf16.mxu0 0
    %65 = vmatpush1.bf16.msra.mxu0 0
    %66 = vmatprep.subr.bf16.mxu0 0
    %67 = vmatpush1.bf16.msra.mxu0 0
    %68 = vmatprep.subr.bf16.mxu0 0
    %69 = vmatpush1.bf16.msra.mxu0 0
    %70 = vmatprep.subr.bf16.mxu0 0
    %71 = vmatpush1.bf16.msra.mxu0 0
    %72 = vmatprep.subr.bf16.mxu0 0
    %73 = vmatpush1.bf16.msra.mxu0 0
    %74 = vmatprep.subr.bf16.mxu0 0
    %75 = vmatpush1.bf16.msra.mxu0 0
    %76 = vmatprep.subr.bf16.mxu0 0
    %77 = vmatpush1.bf16.msra.mxu0 0
    %78 = vmatprep.subr.bf16.mxu0 0
    %79 = vmatpush1.bf16.msra.mxu0 0
    %80 = vmatprep.subr.bf16.mxu0 0
    %81 = vmatpush1.bf16.msra.mxu0 0
    %82 = vmatprep.mubr.bf16.mxu0 0
    %83 = vmatmul.mubr.bf16.gmra.mrb[0].mxu0 %v48
    %v84 = vpop.f32.mrb[0].mxu0
    %v85 = vadd.f32 %v27, %v84
    %v86 = vpop.f32.mrb[0].mxu0
    %v87 = vpop.f32.mrb[0].mxu0
    %v88 = vadd.f32 %v27, %v87
    %v89 = vpop.f32.mrb[0].mxu0
    %90 = vdwg.mxu0
    %vm91 = vcmask 130048
    %92 = vst.msk [vmem:[#allocation2] sm:$0xff] %vm91, %v85
    %93 = vst.msk [vmem:[#allocation2 + $0x8] sm:$0xff] %vm91, %v88
    // Predicated region
    $region14: #{decoder_forward.5} parent=1 // pred_check
      _
    $region15: #{decoder_forward.5} parent=1 // pred_check_branch
      %95 = sbr.rel (0) target = $region17
    $region16: #{decoder_forward.5} parent=1 // pred_region
      %s97 = ssub.s32 256, 256
      %98 = vsyncadd [#allocation3], %s97
      %s99 = sshll.u32 [#allocation2], 4
      %s100 = int_to_ptr.vmem [resolvable:$true] %s99
      %105 = dma.vmem_to_hbm [thread:$0]  %s100, 256, %s3, [#allocation3], 128, 128, 8
    $region17: #{decoder_forward.5} parent=1 // pred_fallthru
      _
    // Predicated region
    $region18: #{decoder_forward.5} parent=1 // pred_check
      _
    $region19: #{decoder_forward.5} parent=1 // pred_check_branch
      %107 = sbr.rel (0) target = $region21
    $region20: #{decoder_forward.5} parent=1 // pred_region
      %108 = dma.done [#allocation3], 256
    $region21: #{decoder_forward.5} parent=1 // pred_fallthru
      _
    %109 = vsyncpa [#allocation3], 1

// kernel: decoder_forward.3
$region0: #{decoder_forward.3}
  #allocation0 [shape = 'u32[]', space=smem, size = 0x4, offset = 0x4, fixed_abs, tag = 'smem constant byte address 0x4 - core index']
  #allocation1 [shape = 'u32[144,128]{1,0:T(1,128)}', space=vmem, size = 0x12000, scoped, tag = 'internal scratch']
  %s0 = inlined_call_operand.vmem [shape: bf16[8,8,32], index: 0, kind: input, shape index: {}]
  %s1 = inlined_call_operand.vmem [shape: f32[8,32], index: 1, kind: input, shape index: {}]
  %s2 = inlined_call_operand.vmem [shape: f32[8,32], index: 2, kind: input, shape index: {}]
  %s3 = inlined_call_operand.vmem [shape: bf16[32,128], index: 3, kind: input, shape index: {}]
  %s4 = inlined_call_operand.vmem [shape: bf16[32,128], index: 4, kind: input, shape index: {}]
  %s5 = inlined_call_operand.vmem [shape: f32[1,128], index: 5, kind: input, shape index: {}]
  %s6 = inlined_call_operand.vmem [shape: bf16[8,8,32], index: 6, kind: output, shape index: {0}]
  %s7 = inlined_call_operand.vmem [shape: f32[8,32], index: 7, kind: output, shape index: {1}]
  %s8 = inlined_call_operand.vmem [shape: f32[8,32], index: 8, kind: output, shape index: {2}]
  %9 = xla_tuple %s6, %s7, %s8
  %s10 = sld [smem:[#allocation0]]
  $region54: #{decoder_forward.3} parent=0
    _
  %s12 = ssub.s32 1, %s10
  %s13 = scalar_select 0, %s12, %s10
  // Predicated region
  $region2: #{decoder_forward.3} parent=0 // pred_check
    _
  $region3: #{decoder_forward.3} parent=0 // pred_check_branch
    %15 = sbr.rel (0) target = $region5
  $region4: #{decoder_forward.3} parent=0 // pred_region
    _
  $region5: #{decoder_forward.3} parent=0 // pred_fallthru
    _
  // Predicated region
  $region6: #{decoder_forward.3} parent=0 // pred_check
    _
  $region7: #{decoder_forward.3} parent=0 // pred_check_branch
    %17 = sbr.rel (0) target = $region9
  $region8: #{decoder_forward.3} parent=0 // pred_region
    _
  $region9: #{decoder_forward.3} parent=0 // pred_fallthru
    _
  // Predicated region
  $region10: #{decoder_forward.3} parent=0 // pred_check
    _
  $region11: #{decoder_forward.3} parent=0 // pred_check_branch
    %19 = sbr.rel (0) target = $region13
  $region12: #{decoder_forward.3} parent=0 // pred_region
    _
  $region13: #{decoder_forward.3} parent=0 // pred_fallthru
    _
  // Predicated region
  $region14: #{decoder_forward.3} parent=0 // pred_check
    _
  $region15: #{decoder_forward.3} parent=0 // pred_check_branch
    %21 = sbr.rel (0) target = $region17
  $region16: #{decoder_forward.3} parent=0 // pred_region
    _
  $region17: #{decoder_forward.3} parent=0 // pred_fallthru
    _
  // Predicated region
  $region18: #{decoder_forward.3} parent=0 // pred_check
    _
  $region19: #{decoder_forward.3} parent=0 // pred_check_branch
    %23 = sbr.rel (0) target = $region21
  $region20: #{decoder_forward.3} parent=0 // pred_region
    _
  $region21: #{decoder_forward.3} parent=0 // pred_fallthru
    _
  // Predicated region
  $region22: #{decoder_forward.3} parent=0 // pred_check
    _
  $region23: #{decoder_forward.3} parent=0 // pred_check_branch
    %25 = sbr.rel (0) target = $region25
  $region24: #{decoder_forward.3} parent=0 // pred_region
    _
  $region25: #{decoder_forward.3} parent=0 // pred_fallthru
    _
  %p27 = scmp.eq.s32.totalorder 0, 0
  // Predicated region
  $region26: #{decoder_forward.3} parent=0 // pred_check
    %p28 = pneg %p27
  $region27: #{decoder_forward.3} parent=0 // pred_check_branch
    %30 = sbr.rel (%p28) target = $region29
  $region28: #{decoder_forward.3} parent=0 // pred_region
    %v31 = vld [vmem:[%s1] sm:$0xff]
    %vm32 = vcmask 261120
    %33 = vst.msk [vmem:[%s7] sm:$0xff] %vm32, %v31
    %v34 = vld [vmem:[%s2] sm:$0xff]
    %35 = vst.msk [vmem:[%s8] sm:$0xff] %vm32, %v34
  $region29: #{decoder_forward.3} parent=0 // pred_fallthru
    _
  %v36 = vld [vmem:[%s5] sm:$0x1]
  %v37 = vld [vmem:[%s7] sm:$0xff]
  %v38 = vld [vmem:[%s8] sm:$0xff]
  %v39 = vld [vmem:[%s0] sm:$0xf]
  %v40 = vld [vmem:[%s3] sm:$0xf]
  %v41 = vld [vmem:[%s3 + $0x4] sm:$0xf]
  %v42 = vld [vmem:[%s3 + $0x8] sm:$0xf]
  %v43 = vld [vmem:[%s3 + $0xc] sm:$0xf]
  %v45 = vlaneseq
  %v46 = vshrl.u32 %v45, 7
  %v47 = vsub.s32 0, %v46
  %v48 = vrot.slane %v36, %v47
  %v54 = vunpack.c.l.b16 %v40
  %v55 = vunpack.c.l.b16 %v41
  %v56 = vunpack.c.l.b16 %v42
  %v57 = vunpack.c.l.b16 %v43
  %v58 = vpack.c.b16 %v55, %v54
  %v59 = vpack.c.b16 %v57, %v56
  %vm62 = vcmask 261120
  %v64 = vsel %vm62, %v39, 0
  %66 = vmatprep.subr.bf16.mxu0 0
  %67 = vmatpush1.bf16.msra.mxu0 %v58
  %68 = vmatprep.subr.bf16.mxu0 0
  %69 = vmatpush1.bf16.msra.mxu0 %v59
  %70 = vmatprep.subr.bf16.mxu0 0
  %71 = vmatpush1.bf16.msra.mxu0 0
  %72 = vmatprep.subr.bf16.mxu0 0
  %73 = vmatpush1.bf16.msra.mxu0 0
  %74 = vmatprep.subr.bf16.mxu0 0
  %75 = vmatpush1.bf16.msra.mxu0 0
  %76 = vmatprep.subr.bf16.mxu0 0
  %77 = vmatpush1.bf16.msra.mxu0 0
  %78 = vmatprep.subr.bf16.mxu0 0
  %79 = vmatpush1.bf16.msra.mxu0 0
  %80 = vmatprep.subr.bf16.mxu0 0
  %81 = vmatpush1.bf16.msra.mxu0 0
  %82 = vmatprep.subr.bf16.mxu0 0
  %83 = vmatpush1.bf16.msra.mxu0 0
  %84 = vmatprep.subr.bf16.mxu0 0
  %85 = vmatpush1.bf16.msra.mxu0 0
  %86 = vmatprep.subr.bf16.mxu0 0
  %87 = vmatpush1.bf16.msra.mxu0 0
  %88 = vmatprep.subr.bf16.mxu0 0
  %89 = vmatpush1.bf16.msra.mxu0 0
  %90 = vmatprep.subr.bf16.mxu0 0
  %91 = vmatpush1.bf16.msra.mxu0 0
  %92 = vmatprep.subr.bf16.mxu0 0
  %93 = vmatpush1.bf16.msra.mxu0 0
  %94 = vmatprep.subr.bf16.mxu0 0
  %95 = vmatpush1.bf16.msra.mxu0 0
  %96 = vmatprep.subr.bf16.mxu0 0
  %97 = vmatpush1.bf16.msra.mxu0 0
  %98 = vmatprep.mubr.bf16.mxu0 0
  %99 = vmatmul.mubr.bf16.gmra.mrb[0].mxu0 %v64
  %v100 = vpop.f32.mrb[0].mxu0
  %v101 = vadd.f32 %v48, %v100
  %v102 = vpop.f32.mrb[0].mxu0
  %v103 = vpop.f32.mrb[0].mxu0
  %v104 = vpop.f32.mrb[0].mxu0
  %105 = vdwg.mxu0
  %v106 = vpack.c.bf16 %v37, %v37
  %v107 = vld [vmem:[%s4] sm:$0xf]
  %v108 = vld [vmem:[%s4 + $0x4] sm:$0xf]
  %v109 = vld [vmem:[%s4 + $0x8] sm:$0xf]
  %v110 = vld [vmem:[%s4 + $0xc] sm:$0xf]
  %v115 = vunpack.c.l.b16 %v107
  %v116 = vunpack.c.l.b16 %v108
  %v117 = vunpack.c.l.b16 %v109
  %v118 = vunpack.c.l.b16 %v110
  %v119 = vpack.c.b16 %v116, %v115
  %v120 = vpack.c.b16 %v118, %v117
  %v124 = vsel %vm62, %v106, 0
  %126 = vmatprep.subr.bf16.mxu0 0
  %127 = vmatpush1.bf16.msra.mxu0 %v119
  %128 = vmatprep.subr.bf16.mxu0 0
  %129 = vmatpush1.bf16.msra.mxu0 %v120
  %130 = vmatprep.subr.bf16.mxu0 0
  %131 = vmatpush1.bf16.msra.mxu0 0
  %132 = vmatprep.subr.bf16.mxu0 0
  %133 = vmatpush1.bf16.msra.mxu0 0
  %134 = vmatprep.subr.bf16.mxu0 0
  %135 = vmatpush1.bf16.msra.mxu0 0
  %136 = vmatprep.subr.bf16.mxu0 0
  %137 = vmatpush1.bf16.msra.mxu0 0
  %138 = vmatprep.subr.bf16.mxu0 0
  %139 = vmatpush1.bf16.msra.mxu0 0
  %140 = vmatprep.subr.bf16.mxu0 0
  %141 = vmatpush1.bf16.msra.mxu0 0
  %142 = vmatprep.subr.bf16.mxu0 0
  %143 = vmatpush1.bf16.msra.mxu0 0
  %144 = vmatprep.subr.bf16.mxu0 0
  %145 = vmatpush1.bf16.msra.mxu0 0
  %146 = vmatprep.subr.bf16.mxu0 0
  %147 = vmatpush1.bf16.msra.mxu0 0
  %148 = vmatprep.subr.bf16.mxu0 0
  %149 = vmatpush1.bf16.msra.mxu0 0
  %150 = vmatprep.subr.bf16.mxu0 0
  %151 = vmatpush1.bf16.msra.mxu0 0
  %152 = vmatprep.subr.bf16.mxu0 0
  %153 = vmatpush1.bf16.msra.mxu0 0
  %154 = vmatprep.subr.bf16.mxu0 0
  %155 = vmatpush1.bf16.msra.mxu0 0
  %156 = vmatprep.subr.bf16.mxu0 0
  %157 = vmatpush1.bf16.msra.mxu0 0
  %158 = vmatprep.mubr.bf16.mxu0 0
  %159 = vmatmul.mubr.bf16.gmra.mrb[0].mxu0 %v124
  %v160 = vpop.f32.mrb[0].mxu0
  %v161 = vadd.f32 0.0, %v160
  %v162 = vpop.f32.mrb[0].mxu0
  %v163 = vpop.f32.mrb[0].mxu0
  %v164 = vpop.f32.mrb[0].mxu0
  %165 = vdwg.mxu0
  %v166 = vadd.f32 %v101, %v161
  %v167 = vxor.u32 %v166, 2147483648
  %v168 = vmul.f32 %v167, 1.442695
  %v169 = vpow.pop %v168
  %v170 = vadd.f32 %v169, 1.0
  %v171 = vrcp.pop %v170
  %v172 = vmul.f32 1.0, %v171
  %v173 = vtanh.pop %v166
  %175 = vrot.lane.b32.xlu0 %v38, 32
  %v176 = vpop.permute.xlu0 %175
  %v178 = vmul.f32 %v172, %v176
  %180 = vrot.lane.b32.xlu0 %v173, 64
  %v181 = vpop.permute.xlu0 %180
  %v183 = vmul.f32 %v172, %v181
  %185 = vrot.lane.b32.xlu0 %v183, 32
  %v186 = vpop.permute.xlu0 %185
  %v188 = vadd.f32 %v178, %v186
  %v189 = vtanh.pop %v188
  %191 = vrot.lane.b32.xlu0 %v189, 64
  %v192 = vpop.permute.xlu0 %191
  %v194 = vmul.f32 %v172, %v192
  %v195 = vpack.c.bf16 %v194, %v194
  %v197 = vunpack.c.l.b16 %v195
  %v198 = vpack.c.b16 %v197, %v197
  %199 = vrot.lane.b32.xlu0 %v198, 32
  %v200 = vpop.permute.xlu0 %199
  %vm202 = vcmask 257024
  %203 = vst.msk [vmem:[%s6] sm:$0xf] %vm202, %v200
  %s204 = scalar_lea.vmem %s0, 4
  %v205 = vld [vmem:[%s204] sm:$0xf]
  %v206 = vld [vmem:[%s3] sm:$0xf]
  %v207 = vld [vmem:[%s3 + $0x4] sm:$0xf]
  %v208 = vld [vmem:[%s3 + $0x8] sm:$0xf]
  %v209 = vld [vmem:[%s3 + $0xc] sm:$0xf]
  %v214 = vunpack.c.l.b16 %v206
  %v215 = vunpack.c.l.b16 %v207
  %v216 = vunpack.c.l.b16 %v208
  %v217 = vunpack.c.l.b16 %v209
  %v218 = vpack.c.b16 %v215, %v214
  %v219 = vpack.c.b16 %v217, %v216
  %v223 = vsel %vm62, %v205, 0
  %225 = vmatprep.subr.bf16.mxu0 0
  %226 = vmatpush1.bf16.msra.mxu0 %v218
  %227 = vmatprep.subr.bf16.mxu0 0
  %228 = vmatpush1.bf16.msra.mxu0 %v219
  %229 = vmatprep.subr.bf16.mxu0 0
  %230 = vmatpush1.bf16.msra.mxu0 0
  %231 = vmatprep.subr.bf16.mxu0 0
  %232 = vmatpush1.bf16.msra.mxu0 0
  %233 = vmatprep.subr.bf16.mxu0 0
  %234 = vmatpush1.bf16.msra.mxu0 0
  %235 = vmatprep.subr.bf16.mxu0 0
  %236 = vmatpush1.bf16.msra.mxu0 0
  %237 = vmatprep.subr.bf16.mxu0 0
  %238 = vmatpush1.bf16.msra.mxu0 0
  %239 = vmatprep.subr.bf16.mxu0 0
  %240 = vmatpush1.bf16.msra.mxu0 0
  %241 = vmatprep.subr.bf16.mxu0 0
  %242 = vmatpush1.bf16.msra.mxu0 0
  %243 = vmatprep.subr.bf16.mxu0 0
  %244 = vmatpush1.bf16.msra.mxu0 0
  %245 = vmatprep.subr.bf16.mxu0 0
  %246 = vmatpush1.bf16.msra.mxu0 0
  %247 = vmatprep.subr.bf16.mxu0 0
  %248 = vmatpush1.bf16.msra.mxu0 0
  %249 = vmatprep.subr.bf16.mxu0 0
  %250 = vmatpush1.bf16.msra.mxu0 0
  %251 = vmatprep.subr.bf16.mxu0 0
  %252 = vmatpush1.bf16.msra.mxu0 0
  %253 = vmatprep.subr.bf16.mxu0 0
  %254 = vmatpush1.bf16.msra.mxu0 0
  %255 = vmatprep.subr.bf16.mxu0 0
  %256 = vmatpush1.bf16.msra.mxu0 0
  %257 = vmatprep.mubr.bf16.mxu0 0
  %258 = vmatmul.mubr.bf16.gmra.mrb[0].mxu0 %v223
  %v259 = vpop.f32.mrb[0].mxu0
  %v260 = vadd.f32 %v48, %v259
  %v261 = vpop.f32.mrb[0].mxu0
  %v262 = vpop.f32.mrb[0].mxu0
  %v263 = vpop.f32.mrb[0].mxu0
  %264 = vdwg.mxu0
  %v265 = vld [vmem:[%s4] sm:$0xf]
  %v266 = vld [vmem:[%s4 + $0x4] sm:$0xf]
  %v267 = vld [vmem:[%s4 + $0x8] sm:$0xf]
  %v268 = vld [vmem:[%s4 + $0xc] sm:$0xf]
  %269 = vrot.lane.b32.xlu0 %v195, 32
  %v270 = vpop.permute.xlu0 %269
  %v275 = vunpack.c.l.b16 %v265
  %v276 = vunpack.c.l.b16 %v266
  %v277 = vunpack.c.l.b16 %v267
  %v278 = vunpack.c.l.b16 %v268
  %v279 = vpack.c.b16 %v276, %v275
  %v280 = vpack.c.b16 %v278, %v277
  %v284 = vsel %vm62, %v270, 0
  %286 = vmatprep.subr.bf16.mxu0 0
  %287 = vmatpush1.bf16.msra.mxu0 %v279
  %288 = vmatprep.subr.bf16.mxu0 0
  %289 = vmatpush1.bf16.msra.mxu0 %v280
  %290 = vmatprep.subr.bf16.mxu0 0
  %291 = vmatpush1.bf16.msra.mxu0 0
  %292 = vmatprep.subr.bf16.mxu0 0
  %293 = vmatpush1.bf16.msra.mxu0 0
  %294 = vmatprep.subr.bf16.mxu0 0
  %295 = vmatpush1.bf16.msra.mxu0 0
  %296 = vmatprep.subr.bf16.mxu0 0
  %297 = vmatpush1.bf16.msra.mxu0 0
  %298 = vmatprep.subr.bf16.mxu0 0
  %299 = vmatpush1.bf16.msra.mxu0 0
  %300 = vmatprep.subr.bf16.mxu0 0
  %301 = vmatpush1.bf16.msra.mxu0 0
  %302 = vmatprep.subr.bf16.mxu0 0
  %303 = vmatpush1.bf16.msra.mxu0 0
  %304 = vmatprep.subr.bf16.mxu0 0
  %305 = vmatpush1.bf16.msra.mxu0 0
  %306 = vmatprep.subr.bf16.mxu0 0
  %307 = vmatpush1.bf16.msra.mxu0 0
  %308 = vmatprep.subr.bf16.mxu0 0
  %309 = vmatpush1.bf16.msra.mxu0 0
  %310 = vmatprep.subr.bf16.mxu0 0
  %311 = vmatpush1.bf16.msra.mxu0 0
  %312 = vmatprep.subr.bf16.mxu0 0
  %313 = vmatpush1.bf16.msra.mxu0 0
  %314 = vmatprep.subr.bf16.mxu0 0
  %315 = vmatpush1.bf16.msra.mxu0 0
  %316 = vmatprep.subr.bf16.mxu0 0
  %317 = vmatpush1.bf16.msra.mxu0 0
  %318 = vmatprep.mubr.bf16.mxu0 0
  %319 = vmatmul.mubr.bf16.gmra.mrb[0].mxu0 %v284
  %v320 = vpop.f32.mrb[0].mxu0
  %v321 = vadd.f32 0.0, %v320
  %v322 = vpop.f32.mrb[0].mxu0
  %v323 = vpop.f32.mrb[0].mxu0
  %v324 = vpop.f32.mrb[0].mxu0
  %325 = vdwg.mxu0
  %v326 = vadd.f32 %v260, %v321
  %v327 = vxor.u32 %v326, 2147483648
  %v328 = vmul.f32 %v327, 1.442695
  %v329 = vpow.pop %v328
  %v330 = vadd.f32 %v329, 1.0
  %v331 = vrcp.pop %v330
  %v332 = vmul.f32 1.0, %v331
  %v333 = vtanh.pop %v326
  %v334 = vmul.f32 %v332, %v188
  %336 = vrot.lane.b32.xlu0 %v333, 64
  %v337 = vpop.permute.xlu0 %336
  %v339 = vmul.f32 %v332, %v337
  %341 = vrot.lane.b32.xlu0 %v339, 32
  %v342 = vpop.permute.xlu0 %341
  %v344 = vadd.f32 %v334, %v342
  %v345 = vtanh.pop %v344
  %347 = vrot.lane.b32.xlu0 %v345, 64
  %v348 = vpop.permute.xlu0 %347
  %v350 = vmul.f32 %v332, %v348
  %v351 = vpack.c.bf16 %v350, %v350
  %v353 = vunpack.c.l.b16 %v351
  %v354 = vpack.c.b16 %v353, %v353
  %355 = vrot.lane.b32.xlu0 %v354, 32
  %v356 = vpop.permute.xlu0 %355
  %s358 = scalar_lea.vmem %s6, 4
  %359 = vst.msk [vmem:[%s358] sm:$0xf] %vm202, %v356
  %s360 = scalar_lea.vmem %s0, 8
  %v361 = vld [vmem:[%s360] sm:$0xf]
  %v362 = vld [vmem:[%s3] sm:$0xf]
  %v363 = vld [vmem:[%s3 + $0x4] sm:$0xf]
  %v364 = vld [vmem:[%s3 + $0x8] sm:$0xf]
  %v365 = vld [vmem:[%s3 + $0xc] sm:$0xf]
  %v370 = vunpack.c.l.b16 %v362
  %v371 = vunpack.c.l.b16 %v363
  %v372 = vunpack.c.l.b16 %v364
  %v373 = vunpack.c.l.b16 %v365
  %v374 = vpack.c.b16 %v371, %v370
  %v375 = vpack.c.b16 %v373, %v372
  %v379 = vsel %vm62, %v361, 0
  %381 = vmatprep.subr.bf16.mxu0 0
  %382 = vmatpush1.bf16.msra.mxu0 %v374
  %383 = vmatprep.subr.bf16.mxu0 0
  %384 = vmatpush1.bf16.msra.mxu0 %v375
  %385 = vmatprep.subr.bf16.mxu0 0
  %386 = vmatpush1.bf16.msra.mxu0 0
  %387 = vmatprep.subr.bf16.mxu0 0
  %388 = vmatpush1.bf16.msra.mxu0 0
  %389 = vmatprep.subr.bf16.mxu0 0
  %390 = vmatpush1.bf16.msra.mxu0 0
  %391 = vmatprep.subr.bf16.mxu0 0
  %392 = vmatpush1.bf16.msra.mxu0 0
  %393 = vmatprep.subr.bf16.mxu0 0
  %394 = vmatpush1.bf16.msra.mxu0 0
  %395 = vmatprep.subr.bf16.mxu0 0
  %396 = vmatpush1.bf16.msra.mxu0 0
  %397 = vmatprep.subr.bf16.mxu0 0
  %398 = vmatpush1.bf16.msra.mxu0 0
  %399 = vmatprep.subr.bf16.mxu0 0
  %400 = vmatpush1.bf16.msra.mxu0 0
  %401 = vmatprep.subr.bf16.mxu0 0
  %402 = vmatpush1.bf16.msra.mxu0 0
  %403 = vmatprep.subr.bf16.mxu0 0
  %404 = vmatpush1.bf16.msra.mxu0 0
  %405 = vmatprep.subr.bf16.mxu0 0
  %406 = vmatpush1.bf16.msra.mxu0 0
  %407 = vmatprep.subr.bf16.mxu0 0
  %408 = vmatpush1.bf16.msra.mxu0 0
  %409 = vmatprep.subr.bf16.mxu0 0
  %410 = vmatpush1.bf16.msra.mxu0 0
  %411 = vmatprep.subr.bf16.mxu0 0
  %412 = vmatpush1.bf16.msra.mxu0 0
  %413 = vmatprep.mubr.bf16.mxu0 0
  %414 = vmatmul.mubr.bf16.gmra.mrb[0].mxu0 %v379
  %v415 = vpop.f32.mrb[0].mxu0
  %v416 = vadd.f32 %v48, %v415
  %v417 = vpop.f32.mrb[0].mxu0
  %v418 = vpop.f32.mrb[0].mxu0
  %v419 = vpop.f32.mrb[0].mxu0
  %420 = vdwg.mxu0
  %v421 = vld [vmem:[%s4] sm:$0xf]
  %v422 = vld [vmem:[%s4 + $0x4] sm:$0xf]
  %v423 = vld [vmem:[%s4 + $0x8] sm:$0xf]
  %v424 = vld [vmem:[%s4 + $0xc] sm:$0xf]
  %425 = vrot.lane.b32.xlu0 %v351, 32
  %v426 = vpop.permute.xlu0 %425
  %v431 = vunpack.c.l.b16 %v421
  %v432 = vunpack.c.l.b16 %v422
  %v433 = vunpack.c.l.b16 %v423
  %v434 = vunpack.c.l.b16 %v424
  %v435 = vpack.c.b16 %v432, %v431
  %v436 = vpack.c.b16 %v434, %v433
  %v440 = vsel %vm62, %v426, 0
  %442 = vmatprep.subr.bf16.mxu0 0
  %443 = vmatpush1.bf16.msra.mxu0 %v435
  %444 = vmatprep.subr.bf16.mxu0 0
  %445 = vmatpush1.bf16.msra.mxu0 %v436
  %446 = vmatprep.subr.bf16.mxu0 0
  %447 = vmatpush1.bf16.msra.mxu0 0
  %448 = vmatprep.subr.bf16.mxu0 0
  %449 = vmatpush1.bf16.msra.mxu0 0
  %450 = vmatprep.subr.bf16.mxu0 0
  %451 = vmatpush1.bf16.msra.mxu0 0
  %452 = vmatprep.subr.bf16.mxu0 0
  %453 = vmatpush1.bf16.msra.mxu0 0
  %454 = vmatprep.subr.bf16.mxu0 0
  %455 = vmatpush1.bf16.msra.mxu0 0
  %456 = vmatprep.subr.bf16.mxu0 0
  %457 = vmatpush1.bf16.msra.mxu0 0
  %458 = vmatprep.subr.bf16.mxu0 0
  %459 = vmatpush1.bf16.msra.mxu0 0
  %460 = vmatprep.subr.bf16.mxu0 0
  %461 = vmatpush1.bf16.msra.mxu0 0
  %462 = vmatprep.subr.bf16.mxu0 0
  %463 = vmatpush1.bf16.msra.mxu0 0
  %464 = vmatprep.subr.bf16.mxu0 0
  %465 = vmatpush1.bf16.msra.mxu0 0
  %466 = vmatprep.subr.bf16.mxu0 0
  %467 = vmatpush1.bf16.msra.mxu0 0
  %468 = vmatprep.subr.bf16.mxu0 0
  %469 = vmatpush1.bf16.msra.mxu0 0
  %470 = vmatprep.subr.bf16.mxu0 0
  %471 = vmatpush1.bf16.msra.mxu0 0
  %472 = vmatprep.subr.bf16.mxu0 0
  %473 = vmatpush1.bf16.msra.mxu0 0
  %474 = vmatprep.mubr.bf16.mxu0 0
  %475 = vmatmul.mubr.bf16.gmra.mrb[0].mxu0 %v440
  %v476 = vpop.f32.mrb[0].mxu0
  %v477 = vadd.f32 0.0, %v476
  %v478 = vpop.f32.mrb[0].mxu0
  %v479 = vpop.f32.mrb[0].mxu0
  %v480 = vpop.f32.mrb[0].mxu0
  %481 = vdwg.mxu0
  %v482 = vadd.f32 %v416, %v477
  %v483 = vxor.u32 %v482, 2147483648
  %v484 = vmul.f32 %v483, 1.442695
  %v485 = vpow.pop %v484
  %v486 = vadd.f32 %v485, 1.0
  %v487 = vrcp.pop %v486
  %v488 = vmul.f32 1.0, %v487
  %v489 = vtanh.pop %v482
  %v490 = vmul.f32 %v488, %v344
  %492 = vrot.lane.b32.xlu0 %v489, 64
  %v493 = vpop.permute.xlu0 %492
  %v495 = vmul.f32 %v488, %v493
  %497 = vrot.lane.b32.xlu0 %v495, 32
  %v498 = vpop.permute.xlu0 %497
  %v500 = vadd.f32 %v490, %v498
  %v501 = vtanh.pop %v500
  %503 = vrot.lane.b32.xlu0 %v501, 64
  %v504 = vpop.permute.xlu0 %503
  %v506 = vmul.f32 %v488, %v504
  %v507 = vpack.c.bf16 %v506, %v506
  %v509 = vunpack.c.l.b16 %v507
  %v510 = vpack.c.b16 %v509, %v509
  %511 = vrot.lane.b32.xlu0 %v510, 32
  %v512 = vpop.permute.xlu0 %511
  %s514 = scalar_lea.vmem %s6, 8
  %515 = vst.msk [vmem:[%s514] sm:$0xf] %vm202, %v512
  %s516 = scalar_lea.vmem %s0, 12
  %v517 = vld [vmem:[%s516] sm:$0xf]
  %v518 = vld [vmem:[%s3] sm:$0xf]
  %v519 = vld [vmem:[%s3 + $0x4] sm:$0xf]
  %v520 = vld [vmem:[%s3 + $0x8] sm:$0xf]
  %v521 = vld [vmem:[%s3 + $0xc] sm:$0xf]
  %v526 = vunpack.c.l.b16 %v518
  %v527 = vunpack.c.l.b16 %v519
  %v528 = vunpack.c.l.b16 %v520
  %v529 = vunpack.c.l.b16 %v521
  %v530 = vpack.c.b16 %v527, %v526
  %v531 = vpack.c.b16 %v529, %v528
  %v535 = vsel %vm62, %v517, 0
  %537 = vmatprep.subr.bf16.mxu0 0
  %538 = vmatpush1.bf16.msra.mxu0 %v530
  %539 = vmatprep.subr.bf16.mxu0 0
  %540 = vmatpush1.bf16.msra.mxu0 %v531
  %541 = vmatprep.subr.bf16.mxu0 0
  %542 = vmatpush1.bf16.msra.mxu0 0
  %543 = vmatprep.subr.bf16.mxu0 0
  %544 = vmatpush1.bf16.msra.mxu0 0
  %545 = vmatprep.subr.bf16.mxu0 0
  %546 = vmatpush1.bf16.msra.mxu0 0
  %547 = vmatprep.subr.bf16.mxu0 0
  %548 = vmatpush1.bf16.msra.mxu0 0
  %549 = vmatprep.subr.bf16.mxu0 0
  %550 = vmatpush1.bf16.msra.mxu0 0
  %551 = vmatprep.subr.bf16.mxu0 0
  %552 = vmatpush1.bf16.msra.mxu0 0
  %553 = vmatprep.subr.bf16.mxu0 0
  %554 = vmatpush1.bf16.msra.mxu0 0
  %555 = vmatprep.subr.bf16.mxu0 0
  %556 = vmatpush1.bf16.msra.mxu0 0
  %557 = vmatprep.subr.bf16.mxu0 0
  %558 = vmatpush1.bf16.msra.mxu0 0
  %559 = vmatprep.subr.bf16.mxu0 0
  %560 = vmatpush1.bf16.msra.mxu0 0
  %561 = vmatprep.subr.bf16.mxu0 0
  %562 = vmatpush1.bf16.msra.mxu0 0
  %563 = vmatprep.subr.bf16.mxu0 0
  %564 = vmatpush1.bf16.msra.mxu0 0
  %565 = vmatprep.subr.bf16.mxu0 0
  %566 = vmatpush1.bf16.msra.mxu0 0
  %567 = vmatprep.subr.bf16.mxu0 0
  %568 = vmatpush1.bf16.msra.mxu0 0
  %569 = vmatprep.mubr.bf16.mxu0 0
  %570 = vmatmul.mubr.bf16.gmra.mrb[0].mxu0 %v535
  %v571 = vpop.f32.mrb[0].mxu0
  %v572 = vadd.f32 %v48, %v571
  %v573 = vpop.f32.mrb[0].mxu0
  %v574 = vpop.f32.mrb[0].mxu0
  %v575 = vpop.f32.mrb[0].mxu0
  %576 = vdwg.mxu0
  %v577 = vld [vmem:[%s4] sm:$0xf]
  %v578 = vld [vmem:[%s4 + $0x4] sm:$0xf]
  %v579 = vld [vmem:[%s4 + $0x8] sm:$0xf]
  %v580 = vld [vmem:[%s4 + $0xc] sm:$0xf]
  %581 = vrot.lane.b32.xlu0 %v507, 32
  %v582 = vpop.permute.xlu0 %581
  %v587 = vunpack.c.l.b16 %v577
  %v588 = vunpack.c.l.b16 %v578
  %v589 = vunpack.c.l.b16 %v579
  %v590 = vunpack.c.l.b16 %v580
  %v591 = vpack.c.b16 %v588, %v587
  %v592 = vpack.c.b16 %v590, %v589
  %v596 = vsel %vm62, %v582, 0
  %598 = vmatprep.subr.bf16.mxu0 0
  %599 = vmatpush1.bf16.msra.mxu0 %v591
  %600 = vmatprep.subr.bf16.mxu0 0
  %601 = vmatpush1.bf16.msra.mxu0 %v592
  %602 = vmatprep.subr.bf16.mxu0 0
  %603 = vmatpush1.bf16.msra.mxu0 0
  %604 = vmatprep.subr.bf16.mxu0 0
  %605 = vmatpush1.bf16.msra.mxu0 0
  %606 = vmatprep.subr.bf16.mxu0 0
  %607 = vmatpush1.bf16.msra.mxu0 0
  %608 = vmatprep.subr.bf16.mxu0 0
  %609 = vmatpush1.bf16.msra.mxu0 0
  %610 = vmatprep.subr.bf16.mxu0 0
  %611 = vmatpush1.bf16.msra.mxu0 0
  %612 = vmatprep.subr.bf16.mxu0 0
  %613 = vmatpush1.bf16.msra.mxu0 0
  %614 = vmatprep.subr.bf16.mxu0 0
  %615 = vmatpush1.bf16.msra.mxu0 0
  %616 = vmatprep.subr.bf16.mxu0 0
  %617 = vmatpush1.bf16.msra.mxu0 0
  %618 = vmatprep.subr.bf16.mxu0 0
  %619 = vmatpush1.bf16.msra.mxu0 0
  %620 = vmatprep.subr.bf16.mxu0 0
  %621 = vmatpush1.bf16.msra.mxu0 0
  %622 = vmatprep.subr.bf16.mxu0 0
  %623 = vmatpush1.bf16.msra.mxu0 0
  %624 = vmatprep.subr.bf16.mxu0 0
  %625 = vmatpush1.bf16.msra.mxu0 0
  %626 = vmatprep.subr.bf16.mxu0 0
  %627 = vmatpush1.bf16.msra.mxu0 0
  %628 = vmatprep.subr.bf16.mxu0 0
  %629 = vmatpush1.bf16.msra.mxu0 0
  %630 = vmatprep.mubr.bf16.mxu0 0
  %631 = vmatmul.mubr.bf16.gmra.mrb[0].mxu0 %v596
  %v632 = vpop.f32.mrb[0].mxu0
  %v633 = vadd.f32 0.0, %v632
  %v634 = vpop.f32.mrb[0].mxu0
  %v635 = vpop.f32.mrb[0].mxu0
  %v636 = vpop.f32.mrb[0].mxu0
  %637 = vdwg.mxu0
  %v638 = vadd.f32 %v572, %v633
  %v639 = vxor.u32 %v638, 2147483648
  %v640 = vmul.f32 %v639, 1.442695
  %v641 = vpow.pop %v640
  %v642 = vadd.f32 %v641, 1.0
  %v643 = vrcp.pop %v642
  %v644 = vmul.f32 1.0, %v643
  %v645 = vtanh.pop %v638
  %v646 = vmul.f32 %v644, %v500
  %648 = vrot.lane.b32.xlu0 %v645, 64
  %v649 = vpop.permute.xlu0 %648
  %v651 = vmul.f32 %v644, %v649
  %653 = vrot.lane.b32.xlu0 %v651, 32
  %v654 = vpop.permute.xlu0 %653
  %v656 = vadd.f32 %v646, %v654
  %v657 = vtanh.pop %v656
  %659 = vrot.lane.b32.xlu0 %v657, 64
  %v660 = vpop.permute.xlu0 %659
  %v662 = vmul.f32 %v644, %v660
  %v663 = vpack.c.bf16 %v662, %v662
  %v665 = vunpack.c.l.b16 %v663
  %v666 = vpack.c.b16 %v665, %v665
  %667 = vrot.lane.b32.xlu0 %v666, 32
  %v668 = vpop.permute.xlu0 %667
  %s670 = scalar_lea.vmem %s6, 12
  %671 = vst.msk [vmem:[%s670] sm:$0xf] %vm202, %v668
  %s672 = scalar_lea.vmem %s0, 16
  %v673 = vld [vmem:[%s672] sm:$0xf]
  %v674 = vld [vmem:[%s3] sm:$0xf]
  %v675 = vld [vmem:[%s3 + $0x4] sm:$0xf]
  %v676 = vld [vmem:[%s3 + $0x8] sm:$0xf]
  %v677 = vld [vmem:[%s3 + $0xc] sm:$0xf]
  %v682 = vunpack.c.l.b16 %v674
  %v683 = vunpack.c.l.b16 %v675
  %v684 = vunpack.c.l.b16 %v676
  %v685 = vunpack.c.l.b16 %v677
  %v686 = vpack.c.b16 %v683, %v682
  %v687 = vpack.c.b16 %v685, %v684
  %v691 = vsel %vm62, %v673, 0
  %693 = vmatprep.subr.bf16.mxu0 0
  %694 = vmatpush1.bf16.msra.mxu0 %v686
  %695 = vmatprep.subr.bf16.mxu0 0
  %696 = vmatpush1.bf16.msra.mxu0 %v687
  %697 = vmatprep.subr.bf16.mxu0 0
  %698 = vmatpush1.bf16.msra.mxu0 0
  %699 = vmatprep.subr.bf16.mxu0 0
  %700 = vmatpush1.bf16.msra.mxu0 0
  %701 = vmatprep.subr.bf16.mxu0 0
  %702 = vmatpush1.bf16.msra.mxu0 0
  %703 = vmatprep.subr.bf16.mxu0 0
  %704 = vmatpush1.bf16.msra.mxu0 0
  %705 = vmatprep.subr.bf16.mxu0 0
  %706 = vmatpush1.bf16.msra.mxu0 0
  %707 = vmatprep.subr.bf16.mxu0 0
  %708 = vmatpush1.bf16.msra.mxu0 0
  %709 = vmatprep.subr.bf16.mxu0 0
  %710 = vmatpush1.bf16.msra.mxu0 0
  %711 = vmatprep.subr.bf16.mxu0 0
  %712 = vmatpush1.bf16.msra.mxu0 0
  %713 = vmatprep.subr.bf16.mxu0 0
  %714 = vmatpush1.bf16.msra.mxu0 0
  %715 = vmatprep.subr.bf16.mxu0 0
  %716 = vmatpush1.bf16.msra.mxu0 0
  %717 = vmatprep.subr.bf16.mxu0 0
  %718 = vmatpush1.bf16.msra.mxu0 0
  %719 = vmatprep.subr.bf16.mxu0 0
  %720 = vmatpush1.bf16.msra.mxu0 0
  %721 = vmatprep.subr.bf16.mxu0 0
  %722 = vmatpush1.bf16.msra.mxu0 0
  %723 = vmatprep.subr.bf16.mxu0 0
  %724 = vmatpush1.bf16.msra.mxu0 0
  %725 = vmatprep.mubr.bf16.mxu0 0
  %726 = vmatmul.mubr.bf16.gmra.mrb[0].mxu0 %v691
  %v727 = vpop.f32.mrb[0].mxu0
  %v728 = vadd.f32 %v48, %v727
  %v729 = vpop.f32.mrb[0].mxu0
  %v730 = vpop.f32.mrb[0].mxu0
  %v731 = vpop.f32.mrb[0].mxu0
  %732 = vdwg.mxu0
  %v733 = vld [vmem:[%s4] sm:$0xf]
  %v734 = vld [vmem:[%s4 + $0x4] sm:$0xf]
  %v735 = vld [vmem:[%s4 + $0x8] sm:$0xf]
  %v736 = vld [vmem:[%s4 + $0xc] sm:$0xf]
  %737 = vrot.lane.b32.xlu0 %v663, 32
  %v738 = vpop.permute.xlu0 %737
  %v743 = vunpack.c.l.b16 %v733
  %v744 = vunpack.c.l.b16 %v734
  %v745 = vunpack.c.l.b16 %v735
  %v746 = vunpack.c.l.b16 %v736
  %v747 = vpack.c.b16 %v744, %v743
  %v748 = vpack.c.b16 %v746, %v745
  %v752 = vsel %vm62, %v738, 0
  %754 = vmatprep.subr.bf16.mxu0 0
  %755 = vmatpush1.bf16.msra.mxu0 %v747
  %756 = vmatprep.subr.bf16.mxu0 0
  %757 = vmatpush1.bf16.msra.mxu0 %v748
  %758 = vmatprep.subr.bf16.mxu0 0
  %759 = vmatpush1.bf16.msra.mxu0 0
  %760 = vmatprep.subr.bf16.mxu0 0
  %761 = vmatpush1.bf16.msra.mxu0 0
  %762 = vmatprep.subr.bf16.mxu0 0
  %763 = vmatpush1.bf16.msra.mxu0 0
  %764 = vmatprep.subr.bf16.mxu0 0
  %765 = vmatpush1.bf16.msra.mxu0 0
  %766 = vmatprep.subr.bf16.mxu0 0
  %767 = vmatpush1.bf16.msra.mxu0 0
  %768 = vmatprep.subr.bf16.mxu0 0
  %769 = vmatpush1.bf16.msra.mxu0 0
  %770 = vmatprep.subr.bf16.mxu0 0
  %771 = vmatpush1.bf16.msra.mxu0 0
  %772 = vmatprep.subr.bf16.mxu0 0
  %773 = vmatpush1.bf16.msra.mxu0 0
  %774 = vmatprep.subr.bf16.mxu0 0
  %775 = vmatpush1.bf16.msra.mxu0 0
  %776 = vmatprep.subr.bf16.mxu0 0
  %777 = vmatpush1.bf16.msra.mxu0 0
  %778 = vmatprep.subr.bf16.mxu0 0
  %779 = vmatpush1.bf16.msra.mxu0 0
  %780 = vmatprep.subr.bf16.mxu0 0
  %781 = vmatpush1.bf16.msra.mxu0 0
  %782 = vmatprep.subr.bf16.mxu0 0
  %783 = vmatpush1.bf16.msra.mxu0 0
  %784 = vmatprep.subr.bf16.mxu0 0
  %785 = vmatpush1.bf16.msra.mxu0 0
  %786 = vmatprep.mubr.bf16.mxu0 0
  %787 = vmatmul.mubr.bf16.gmra.mrb[0].mxu0 %v752
  %v788 = vpop.f32.mrb[0].mxu0
  %v789 = vadd.f32 0.0, %v788
  %v790 = vpop.f32.mrb[0].mxu0
  %v791 = vpop.f32.mrb[0].mxu0
  %v792 = vpop.f32.mrb[0].mxu0
  %793 = vdwg.mxu0
  %v794 = vadd.f32 %v728, %v789
  %v795 = vxor.u32 %v794, 2147483648
  %v796 = vmul.f32 %v795, 1.442695
  %v797 = vpow.pop %v796
  %v798 = vadd.f32 %v797, 1.0
  %v799 = vrcp.pop %v798
  %v800 = vmul.f32 1.0, %v799
  %v801 = vtanh.pop %v794
  %v802 = vmul.f32 %v800, %v656
  %804 = vrot.lane.b32.xlu0 %v801, 64
  %v805 = vpop.permute.xlu0 %804
  %v807 = vmul.f32 %v800, %v805
  %809 = vrot.lane.b32.xlu0 %v807, 32
  %v810 = vpop.permute.xlu0 %809
  %v812 = vadd.f32 %v802, %v810
  %v813 = vtanh.pop %v812
  %815 = vrot.lane.b32.xlu0 %v813, 64
  %v816 = vpop.permute.xlu0 %815
  %v818 = vmul.f32 %v800, %v816
  %v819 = vpack.c.bf16 %v818, %v818
  %v821 = vunpack.c.l.b16 %v819
  %v822 = vpack.c.b16 %v821, %v821
  %823 = vrot.lane.b32.xlu0 %v822, 32
  %v824 = vpop.permute.xlu0 %823
  %s826 = scalar_lea.vmem %s6, 16
  %827 = vst.msk [vmem:[%s826] sm:$0xf] %vm202, %v824
  %s828 = scalar_lea.vmem %s0, 20
  %v829 = vld [vmem:[%s828] sm:$0xf]
  %v830 = vld [vmem:[%s3] sm:$0xf]
  %v831 = vld [vmem:[%s3 + $0x4] sm:$0xf]
  %v832 = vld [vmem:[%s3 + $0x8] sm:$0xf]
  %v833 = vld [vmem:[%s3 + $0xc] sm:$0xf]
  %v838 = vunpack.c.l.b16 %v830
  %v839 = vunpack.c.l.b16 %v831
  %v840 = vunpack.c.l.b16 %v832
  %v841 = vunpack.c.l.b16 %v833
  %v842 = vpack.c.b16 %v839, %v838
  %v843 = vpack.c.b16 %v841, %v840
  %v847 = vsel %vm62, %v829, 0
  %849 = vmatprep.subr.bf16.mxu0 0
  %850 = vmatpush1.bf16.msra.mxu0 %v842
  %851 = vmatprep.subr.bf16.mxu0 0
  %852 = vmatpush1.bf16.msra.mxu0 %v843
  %853 = vmatprep.subr.bf16.mxu0 0
  %854 = vmatpush1.bf16.msra.mxu0 0
  %855 = vmatprep.subr.bf16.mxu0 0
  %856 = vmatpush1.bf16.msra.mxu0 0
  %857 = vmatprep.subr.bf16.mxu0 0
  %858 = vmatpush1.bf16.msra.mxu0 0
  %859 = vmatprep.subr.bf16.mxu0 0
  %860 = vmatpush1.bf16.msra.mxu0 0
  %861 = vmatprep.subr.bf16.mxu0 0
  %862 = vmatpush1.bf16.msra.mxu0 0
  %863 = vmatprep.subr.bf16.mxu0 0
  %864 = vmatpush1.bf16.msra.mxu0 0
  %865 = vmatprep.subr.bf16.mxu0 0
  %866 = vmatpush1.bf16.msra.mxu0 0
  %867 = vmatprep.subr.bf16.mxu0 0
  %868 = vmatpush1.bf16.msra.mxu0 0
  %869 = vmatprep.subr.bf16.mxu0 0
  %870 = vmatpush1.bf16.msra.mxu0 0
  %871 = vmatprep.subr.bf16.mxu0 0
  %872 = vmatpush1.bf16.msra.mxu0 0
  %873 = vmatprep.subr.bf16.mxu0 0
  %874 = vmatpush1.bf16.msra.mxu0 0
  %875 = vmatprep.subr.bf16.mxu0 0
  %876 = vmatpush1.bf16.msra.mxu0 0
  %877 = vmatprep.subr.bf16.mxu0 0
  %878 = vmatpush1.bf16.msra.mxu0 0
  %879 = vmatprep.subr.bf16.mxu0 0
  %880 = vmatpush1.bf16.msra.mxu0 0
  %881 = vmatprep.mubr.bf16.mxu0 0
  %882 = vmatmul.mubr.bf16.gmra.mrb[0].mxu0 %v847
  %v883 = vpop.f32.mrb[0].mxu0
  %v884 = vadd.f32 %v48, %v883
  %v885 = vpop.f32.mrb[0].mxu0
  %v886 = vpop.f32.mrb[0].mxu0
  %v887 = vpop.f32.mrb[0].mxu0
  %888 = vdwg.mxu0
  %v889 = vld [vmem:[%s4] sm:$0xf]
  %v890 = vld [vmem:[%s4 + $0x4] sm:$0xf]
  %v891 = vld [vmem:[%s4 + $0x8] sm:$0xf]
  %v892 = vld [vmem:[%s4 + $0xc] sm:$0xf]
  %893 = vrot.lane.b32.xlu0 %v819, 32
  %v894 = vpop.permute.xlu0 %893
  %v899 = vunpack.c.l.b16 %v889
  %v900 = vunpack.c.l.b16 %v890
  %v901 = vunpack.c.l.b16 %v891
  %v902 = vunpack.c.l.b16 %v892
  %v903 = vpack.c.b16 %v900, %v899
  %v904 = vpack.c.b16 %v902, %v901
  %v908 = vsel %vm62, %v894, 0
  %910 = vmatprep.subr.bf16.mxu0 0
  %911 = vmatpush1.bf16.msra.mxu0 %v903
  %912 = vmatprep.subr.bf16.mxu0 0
  %913 = vmatpush1.bf16.msra.mxu0 %v904
  %914 = vmatprep.subr.bf16.mxu0 0
  %915 = vmatpush1.bf16.msra.mxu0 0
  %916 = vmatprep.subr.bf16.mxu0 0
  %917 = vmatpush1.bf16.msra.mxu0 0
  %918 = vmatprep.subr.bf16.mxu0 0
  %919 = vmatpush1.bf16.msra.mxu0 0
  %920 = vmatprep.subr.bf16.mxu0 0
  %921 = vmatpush1.bf16.msra.mxu0 0
  %922 = vmatprep.subr.bf16.mxu0 0
  %923 = vmatpush1.bf16.msra.mxu0 0
  %924 = vmatprep.subr.bf16.mxu0 0
  %925 = vmatpush1.bf16.msra.mxu0 0
  %926 = vmatprep.subr.bf16.mxu0 0
  %927 = vmatpush1.bf16.msra.mxu0 0
  %928 = vmatprep.subr.bf16.mxu0 0
  %929 = vmatpush1.bf16.msra.mxu0 0
  %930 = vmatprep.subr.bf16.mxu0 0
  %931 = vmatpush1.bf16.msra.mxu0 0
  %932 = vmatprep.subr.bf16.mxu0 0
  %933 = vmatpush1.bf16.msra.mxu0 0
  %934 = vmatprep.subr.bf16.mxu0 0
  %935 = vmatpush1.bf16.msra.mxu0 0
  %936 = vmatprep.subr.bf16.mxu0 0
  %937 = vmatpush1.bf16.msra.mxu0 0
  %938 = vmatprep.subr.bf16.mxu0 0
  %939 = vmatpush1.bf16.msra.mxu0 0
  %940 = vmatprep.subr.bf16.mxu0 0
  %941 = vmatpush1.bf16.msra.mxu0 0
  %942 = vmatprep.mubr.bf16.mxu0 0
  %943 = vmatmul.mubr.bf16.gmra.mrb[0].mxu0 %v908
  %v944 = vpop.f32.mrb[0].mxu0
  %v945 = vadd.f32 0.0, %v944
  %v946 = vpop.f32.mrb[0].mxu0
  %v947 = vpop.f32.mrb[0].mxu0
  %v948 = vpop.f32.mrb[0].mxu0
  %949 = vdwg.mxu0
  %v950 = vadd.f32 %v884, %v945
  %v951 = vxor.u32 %v950, 2147483648
  %v952 = vmul.f32 %v951, 1.442695
  %v953 = vpow.pop %v952
  %v954 = vadd.f32 %v953, 1.0
  %v955 = vrcp.pop %v954
  %v956 = vmul.f32 1.0, %v955
  %v957 = vtanh.pop %v950
  %v958 = vmul.f32 %v956, %v812
  %960 = vrot.lane.b32.xlu0 %v957, 64
  %v961 = vpop.permute.xlu0 %960
  %v963 = vmul.f32 %v956, %v961
  %965 = vrot.lane.b32.xlu0 %v963, 32
  %v966 = vpop.permute.xlu0 %965
  %v968 = vadd.f32 %v958, %v966
  %v969 = vtanh.pop %v968
  %971 = vrot.lane.b32.xlu0 %v969, 64
  %v972 = vpop.permute.xlu0 %971
  %v974 = vmul.f32 %v956, %v972
  %v975 = vpack.c.bf16 %v974, %v974
  %v977 = vunpack.c.l.b16 %v975
  %v978 = vpack.c.b16 %v977, %v977
  %979 = vrot.lane.b32.xlu0 %v978, 32
  %v980 = vpop.permute.xlu0 %979
  %s982 = scalar_lea.vmem %s6, 20
  %983 = vst.msk [vmem:[%s982] sm:$0xf] %vm202, %v980
  %s984 = scalar_lea.vmem %s0, 24
  %v985 = vld [vmem:[%s984] sm:$0xf]
  %v986 = vld [vmem:[%s3] sm:$0xf]
  %v987 = vld [vmem:[%s3 + $0x4] sm:$0xf]
  %v988 = vld [vmem:[%s3 + $0x8] sm:$0xf]
  %v989 = vld [vmem:[%s3 + $0xc] sm:$0xf]
  %v994 = vunpack.c.l.b16 %v986
  %v995 = vunpack.c.l.b16 %v987
  %v996 = vunpack.c.l.b16 %v988
  %v997 = vunpack.c.l.b16 %v989
  %v998 = vpack.c.b16 %v995, %v994
  %v999 = vpack.c.b16 %v997, %v996
  %v1003 = vsel %vm62, %v985, 0
  %1005 = vmatprep.subr.bf16.mxu0 0
  %1006 = vmatpush1.bf16.msra.mxu0 %v998
  %1007 = vmatprep.subr.bf16.mxu0 0
  %1008 = vmatpush1.bf16.msra.mxu0 %v999
  %1009 = vmatprep.subr.bf16.mxu0 0
  %1010 = vmatpush1.bf16.msra.mxu0 0
  %1011 = vmatprep.subr.bf16.mxu0 0
  %1012 = vmatpush1.bf16.msra.mxu0 0
  %1013 = vmatprep.subr.bf16.mxu0 0
  %1014 = vmatpush1.bf16.msra.mxu0 0
  %1015 = vmatprep.subr.bf16.mxu0 0
  %1016 = vmatpush1.bf16.msra.mxu0 0
  %1017 = vmatprep.subr.bf16.mxu0 0
  %1018 = vmatpush1.bf16.msra.mxu0 0
  %1019 = vmatprep.subr.bf16.mxu0 0
  %1020 = vmatpush1.bf16.msra.mxu0 0
  %1021 = vmatprep.subr.bf16.mxu0 0
  %1022 = vmatpush1.bf16.msra.mxu0 0
  %1023 = vmatprep.subr.bf16.mxu0 0
  %1024 = vmatpush1.bf16.msra.mxu0 0
  %1025 = vmatprep.subr.bf16.mxu0 0
  %1026 = vmatpush1.bf16.msra.mxu0 0
  %1027 = vmatprep.subr.bf16.mxu0 0
  %1028 = vmatpush1.bf16.msra.mxu0 0
  %1029 = vmatprep.subr.bf16.mxu0 0
  %1030 = vmatpush1.bf16.msra.mxu0 0
  %1031 = vmatprep.subr.bf16.mxu0 0
  %1032 = vmatpush1.bf16.msra.mxu0 0
  %1033 = vmatprep.subr.bf16.mxu0 0
  %1034 = vmatpush1.bf16.msra.mxu0 0
  %1035 = vmatprep.subr.bf16.mxu0 0
  %1036 = vmatpush1.bf16.msra.mxu0 0
  %1037 = vmatprep.mubr.bf16.mxu0 0
  %1038 = vmatmul.mubr.bf16.gmra.mrb[0].mxu0 %v1003
  %v1039 = vpop.f32.mrb[0].mxu0
  %v1040 = vadd.f32 %v48, %v1039
  %v1041 = vpop.f32.mrb[0].mxu0
  %v1042 = vpop.f32.mrb[0].mxu0
  %v1043 = vpop.f32.mrb[0].mxu0
  %1044 = vdwg.mxu0
  %v1045 = vld [vmem:[%s4] sm:$0xf]
  %v1046 = vld [vmem:[%s4 + $0x4] sm:$0xf]
  %v1047 = vld [vmem:[%s4 + $0x8] sm:$0xf]
  %v1048 = vld [vmem:[%s4 + $0xc] sm:$0xf]
  %1049 = vrot.lane.b32.xlu0 %v975, 32
  %v1050 = vpop.permute.xlu0 %1049
  %v1055 = vunpack.c.l.b16 %v1045
  %v1056 = vunpack.c.l.b16 %v1046
  %v1057 = vunpack.c.l.b16 %v1047
  %v1058 = vunpack.c.l.b16 %v1048
  %v1059 = vpack.c.b16 %v1056, %v1055
  %v1060 = vpack.c.b16 %v1058, %v1057
  %v1064 = vsel %vm62, %v1050, 0
  %1066 = vmatprep.subr.bf16.mxu0 0
  %1067 = vmatpush1.bf16.msra.mxu0 %v1059
  %1068 = vmatprep.subr.bf16.mxu0 0
  %1069 = vmatpush1.bf16.msra.mxu0 %v1060
  %1070 = vmatprep.subr.bf16.mxu0 0
  %1071 = vmatpush1.bf16.msra.mxu0 0
  %1072 = vmatprep.subr.bf16.mxu0 0
  %1073 = vmatpush1.bf16.msra.mxu0 0
  %1074 = vmatprep.subr.bf16.mxu0 0
  %1075 = vmatpush1.bf16.msra.mxu0 0
  %1076 = vmatprep.subr.bf16.mxu0 0
  %1077 = vmatpush1.bf16.msra.mxu0 0
  %1078 = vmatprep.subr.bf16.mxu0 0
  %1079 = vmatpush1.bf16.msra.mxu0 0
  %1080 = vmatprep.subr.bf16.mxu0 0
  %1081 = vmatpush1.bf16.msra.mxu0 0
  %1082 = vmatprep.subr.bf16.mxu0 0
  %1083 = vmatpush1.bf16.msra.mxu0 0
  %1084 = vmatprep.subr.bf16.mxu0 0
  %1085 = vmatpush1.bf16.msra.mxu0 0
  %1086 = vmatprep.subr.bf16.mxu0 0
  %1087 = vmatpush1.bf16.msra.mxu0 0
  %1088 = vmatprep.subr.bf16.mxu0 0
  %1089 = vmatpush1.bf16.msra.mxu0 0
  %1090 = vmatprep.subr.bf16.mxu0 0
  %1091 = vmatpush1.bf16.msra.mxu0 0
  %1092 = vmatprep.subr.bf16.mxu0 0
  %1093 = vmatpush1.bf16.msra.mxu0 0
  %1094 = vmatprep.subr.bf16.mxu0 0
  %1095 = vmatpush1.bf16.msra.mxu0 0
  %1096 = vmatprep.subr.bf16.mxu0 0
  %1097 = vmatpush1.bf16.msra.mxu0 0
  %1098 = vmatprep.mubr.bf16.mxu0 0
  %1099 = vmatmul.mubr.bf16.gmra.mrb[0].mxu0 %v1064
  %v1100 = vpop.f32.mrb[0].mxu0
  %v1101 = vadd.f32 0.0, %v1100
  %v1102 = vpop.f32.mrb[0].mxu0
  %v1103 = vpop.f32.mrb[0].mxu0
  %v1104 = vpop.f32.mrb[0].mxu0
  %1105 = vdwg.mxu0
  %v1106 = vadd.f32 %v1040, %v1101
  %v1107 = vxor.u32 %v1106, 2147483648
  %v1108 = vmul.f32 %v1107, 1.442695
  %v1109 = vpow.pop %v1108
  %v1110 = vadd.f32 %v1109, 1.0
  %v1111 = vrcp.pop %v1110
  %v1112 = vmul.f32 1.0, %v1111
  %v1113 = vtanh.pop %v1106
  %v1114 = vmul.f32 %v1112, %v968
  %1116 = vrot.lane.b32.xlu0 %v1113, 64
  %v1117 = vpop.permute.xlu0 %1116
  %v1119 = vmul.f32 %v1112, %v1117
  %1121 = vrot.lane.b32.xlu0 %v1119, 32
  %v1122 = vpop.permute.xlu0 %1121
  %v1124 = vadd.f32 %v1114, %v1122
  %v1125 = vtanh.pop %v1124
  %1127 = vrot.lane.b32.xlu0 %v1125, 64
  %v1128 = vpop.permute.xlu0 %1127
  %v1130 = vmul.f32 %v1112, %v1128
  %v1131 = vpack.c.bf16 %v1130, %v1130
  %v1133 = vunpack.c.l.b16 %v1131
  %v1134 = vpack.c.b16 %v1133, %v1133
  %1135 = vrot.lane.b32.xlu0 %v1134, 32
  %v1136 = vpop.permute.xlu0 %1135
  %s1138 = scalar_lea.vmem %s6, 24
  %1139 = vst.msk [vmem:[%s1138] sm:$0xf] %vm202, %v1136
  %s1140 = scalar_lea.vmem %s0, 28
  %v1141 = vld [vmem:[%s1140] sm:$0xf]
  %v1142 = vld [vmem:[%s3] sm:$0xf]
  %v1143 = vld [vmem:[%s3 + $0x4] sm:$0xf]
  %v1144 = vld [vmem:[%s3 + $0x8] sm:$0xf]
  %v1145 = vld [vmem:[%s3 + $0xc] sm:$0xf]
  %v1150 = vunpack.c.l.b16 %v1142
  %v1151 = vunpack.c.l.b16 %v1143
  %v1152 = vunpack.c.l.b16 %v1144
  %v1153 = vunpack.c.l.b16 %v1145
  %v1154 = vpack.c.b16 %v1151, %v1150
  %v1155 = vpack.c.b16 %v1153, %v1152
  %v1159 = vsel %vm62, %v1141, 0
  %1161 = vmatprep.subr.bf16.mxu0 0
  %1162 = vmatpush1.bf16.msra.mxu0 %v1154
  %1163 = vmatprep.subr.bf16.mxu0 0
  %1164 = vmatpush1.bf16.msra.mxu0 %v1155
  %1165 = vmatprep.subr.bf16.mxu0 0
  %1166 = vmatpush1.bf16.msra.mxu0 0
  %1167 = vmatprep.subr.bf16.mxu0 0
  %1168 = vmatpush1.bf16.msra.mxu0 0
  %1169 = vmatprep.subr.bf16.mxu0 0
  %1170 = vmatpush1.bf16.msra.mxu0 0
  %1171 = vmatprep.subr.bf16.mxu0 0
  %1172 = vmatpush1.bf16.msra.mxu0 0
  %1173 = vmatprep.subr.bf16.mxu0 0
  %1174 = vmatpush1.bf16.msra.mxu0 0
  %1175 = vmatprep.subr.bf16.mxu0 0
  %1176 = vmatpush1.bf16.msra.mxu0 0
  %1177 = vmatprep.subr.bf16.mxu0 0
  %1178 = vmatpush1.bf16.msra.mxu0 0
  %1179 = vmatprep.subr.bf16.mxu0 0
  %1180 = vmatpush1.bf16.msra.mxu0 0
  %1181 = vmatprep.subr.bf16.mxu0 0
  %1182 = vmatpush1.bf16.msra.mxu0 0
  %1183 = vmatprep.subr.bf16.mxu0 0
  %1184 = vmatpush1.bf16.msra.mxu0 0
  %1185 = vmatprep.subr.bf16.mxu0 0
  %1186 = vmatpush1.bf16.msra.mxu0 0
  %1187 = vmatprep.subr.bf16.mxu0 0
  %1188 = vmatpush1.bf16.msra.mxu0 0
  %1189 = vmatprep.subr.bf16.mxu0 0
  %1190 = vmatpush1.bf16.msra.mxu0 0
  %1191 = vmatprep.subr.bf16.mxu0 0
  %1192 = vmatpush1.bf16.msra.mxu0 0
  %1193 = vmatprep.mubr.bf16.mxu0 0
  %1194 = vmatmul.mubr.bf16.gmra.mrb[0].mxu0 %v1159
  %v1195 = vpop.f32.mrb[0].mxu0
  %v1196 = vadd.f32 %v48, %v1195
  %v1197 = vpop.f32.mrb[0].mxu0
  %v1198 = vpop.f32.mrb[0].mxu0
  %v1199 = vpop.f32.mrb[0].mxu0
  %1200 = vdwg.mxu0
  %v1201 = vld [vmem:[%s4] sm:$0xf]
  %v1202 = vld [vmem:[%s4 + $0x4] sm:$0xf]
  %v1203 = vld [vmem:[%s4 + $0x8] sm:$0xf]
  %v1204 = vld [vmem:[%s4 + $0xc] sm:$0xf]
  %1205 = vrot.lane.b32.xlu0 %v1131, 32
  %v1206 = vpop.permute.xlu0 %1205
  %v1211 = vunpack.c.l.b16 %v1201
  %v1212 = vunpack.c.l.b16 %v1202
  %v1213 = vunpack.c.l.b16 %v1203
  %v1214 = vunpack.c.l.b16 %v1204
  %v1215 = vpack.c.b16 %v1212, %v1211
  %v1216 = vpack.c.b16 %v1214, %v1213
  %v1220 = vsel %vm62, %v1206, 0
  %1222 = vmatprep.subr.bf16.mxu0 0
  %1223 = vmatpush1.bf16.msra.mxu0 %v1215
  %1224 = vmatprep.subr.bf16.mxu0 0
  %1225 = vmatpush1.bf16.msra.mxu0 %v1216
  %1226 = vmatprep.subr.bf16.mxu0 0
  %1227 = vmatpush1.bf16.msra.mxu0 0
  %1228 = vmatprep.subr.bf16.mxu0 0
  %1229 = vmatpush1.bf16.msra.mxu0 0
  %1230 = vmatprep.subr.bf16.mxu0 0
  %1231 = vmatpush1.bf16.msra.mxu0 0
  %1232 = vmatprep.subr.bf16.mxu0 0
  %1233 = vmatpush1.bf16.msra.mxu0 0
  %1234 = vmatprep.subr.bf16.mxu0 0
  %1235 = vmatpush1.bf16.msra.mxu0 0
  %1236 = vmatprep.subr.bf16.mxu0 0
  %1237 = vmatpush1.bf16.msra.mxu0 0
  %1238 = vmatprep.subr.bf16.mxu0 0
  %1239 = vmatpush1.bf16.msra.mxu0 0
  %1240 = vmatprep.subr.bf16.mxu0 0
  %1241 = vmatpush1.bf16.msra.mxu0 0
  %1242 = vmatprep.subr.bf16.mxu0 0
  %1243 = vmatpush1.bf16.msra.mxu0 0
  %1244 = vmatprep.subr.bf16.mxu0 0
  %1245 = vmatpush1.bf16.msra.mxu0 0
  %1246 = vmatprep.subr.bf16.mxu0 0
  %1247 = vmatpush1.bf16.msra.mxu0 0
  %1248 = vmatprep.subr.bf16.mxu0 0
  %1249 = vmatpush1.bf16.msra.mxu0 0
  %1250 = vmatprep.subr.bf16.mxu0 0
  %1251 = vmatpush1.bf16.msra.mxu0 0
  %1252 = vmatprep.subr.bf16.mxu0 0
  %1253 = vmatpush1.bf16.msra.mxu0 0
  %1254 = vmatprep.mubr.bf16.mxu0 0
  %1255 = vmatmul.mubr.bf16.gmra.mrb[0].mxu0 %v1220
  %v1256 = vpop.f32.mrb[0].mxu0
  %v1257 = vadd.f32 0.0, %v1256
  %v1258 = vpop.f32.mrb[0].mxu0
  %v1259 = vpop.f32.mrb[0].mxu0
  %v1260 = vpop.f32.mrb[0].mxu0
  %1261 = vdwg.mxu0
  %v1262 = vadd.f32 %v1196, %v1257
  %v1263 = vxor.u32 %v1262, 2147483648
  %v1264 = vmul.f32 %v1263, 1.442695
  %v1265 = vpow.pop %v1264
  %v1266 = vadd.f32 %v1265, 1.0
  %v1267 = vrcp.pop %v1266
  %v1268 = vmul.f32 1.0, %v1267
  %v1269 = vtanh.pop %v1262
  %v1270 = vmul.f32 %v1268, %v1124
  %1272 = vrot.lane.b32.xlu0 %v1269, 64
  %v1273 = vpop.permute.xlu0 %1272
  %v1275 = vmul.f32 %v1268, %v1273
  %1277 = vrot.lane.b32.xlu0 %v1275, 32
  %v1278 = vpop.permute.xlu0 %1277
  %v1280 = vadd.f32 %v1270, %v1278
  %v1281 = vtanh.pop %v1280
  %1283 = vrot.lane.b32.xlu0 %v1281, 64
  %v1284 = vpop.permute.xlu0 %1283
  %v1286 = vmul.f32 %v1268, %v1284
  %v1287 = vpack.c.bf16 %v1286, %v1286
  %v1289 = vunpack.c.l.b16 %v1287
  %v1290 = vpack.c.b16 %v1289, %v1289
  %1291 = vrot.lane.b32.xlu0 %v1290, 32
  %v1292 = vpop.permute.xlu0 %1291
  %s1294 = scalar_lea.vmem %s6, 28
  %1295 = vst.msk [vmem:[%s1294] sm:$0xf] %vm202, %v1292
  %1297 = vrot.lane.b32.xlu0 %v1286, 32
  %v1298 = vpop.permute.xlu0 %1297
  %1300 = vst.msk [vmem:[%s7] sm:$0xff] %vm62, %v1298
  %1302 = vrot.lane.b32.xlu0 %v1280, 96
  %v1303 = vpop.permute.xlu0 %1302
  %1305 = vst.msk [vmem:[%s8] sm:$0xff] %vm62, %v1303
  // Predicated region
  $region30: #{decoder_forward.3} parent=0 // pred_check
    _
  $region31: #{decoder_forward.3} parent=0 // pred_check_branch
    %1307 = sbr.rel (0) target = $region33
  $region32: #{decoder_forward.3} parent=0 // pred_region
    _
  $region33: #{decoder_forward.3} parent=0 // pred_fallthru
    _
  // Predicated region
  $region34: #{decoder_forward.3} parent=0 // pred_check
    _
  $region35: #{decoder_forward.3} parent=0 // pred_check_branch
    %1309 = sbr.rel (0) target = $region37
  $region36: #{decoder_forward.3} parent=0 // pred_region
    _
  $region37: #{decoder_forward.3} parent=0 // pred_fallthru
    _
  // Predicated region
  $region38: #{decoder_forward.3} parent=0 // pred_check
    _
  $region39: #{decoder_forward.3} parent=0 // pred_check_branch
    %1311 = sbr.rel (0) target = $region41
  $region40: #{decoder_forward.3} parent=0 // pred_region
    _
  $region41: #{decoder_forward.3} parent=0 // pred_fallthru
    _
  // Predicated region
  $region42: #{decoder_forward.3} parent=0 // pred_check
    _
  $region43: #{decoder_forward.3} parent=0 // pred_check_branch
    %1313 = sbr.rel (0) target = $region45
  $region44: #{decoder_forward.3} parent=0 // pred_region
    _
  $region45: #{decoder_forward.3} parent=0 // pred_fallthru
    _
  // Predicated region
  $region46: #{decoder_forward.3} parent=0 // pred_check
    _
  $region47: #{decoder_forward.3} parent=0 // pred_check_branch
    %1315 = sbr.rel (0) target = $region49
  $region48: #{decoder_forward.3} parent=0 // pred_region
    _
  $region49: #{decoder_forward.3} parent=0 // pred_fallthru
    _
  // Predicated region
  $region50: #{decoder_forward.3} parent=0 // pred_check
    _
  $region51: #{decoder_forward.3} parent=0 // pred_check_branch
    %1317 = sbr.rel (0) target = $region53
  $region52: #{decoder_forward.3} parent=0 // pred_region
    _
  $region53: #{decoder_forward.3} parent=0 // pred_fallthru
    _

</llo_original>
